<compile_context>
chip_gen: v7x
topology: tpu7x:2x2x1
jax: 0.10.0
libtpu: 0.0.40
codegen_flags: <defaults>
</compile_context>

<pallas_src>
import math
from functools import partial

import jax
import jax.numpy as jnp
from jax import lax
from jax.experimental import pallas as pl
from jax.experimental.pallas import tpu as pltpu


def _conv_gelu_kernel(x_ref, w_ref, b_ref, o_ref, *, K, stride, TH, Wout):
    """One grid step = one batch element x one block of TH output rows.

    x_ref: (1, Hp, Wp, Cin)       full padded image of this batch element
                                  (resident across the row-block axis)
    w_ref: (K*K, Cin, Cout)       per-tap weights, tap index = kh*K + kw
    b_ref: (1, Cout)              bias (f32)
    o_ref: (1, TH, Wout, Cout)    NHWC output tile
    """
    Cin = x_ref.shape[-1]
    Cout = w_ref.shape[-1]

    rows_in = (TH - 1) * stride + K
    row0 = pl.multiple_of(pl.program_id(1) * (TH * stride), TH * stride)
    xs = x_ref[0, pl.ds(row0, rows_in), :, :]            # (rows_in, Wp, Cin)

    # im2col as K*K shifted taps; each tap feeds one small MXU matmul that is
    # accumulated in f32.  The (TH, Wout, Cin) <-> (TH*Wout, Cin) reshapes only
    # merge/split the leading (non-lane) dims, so they are layout no-ops.
    acc = jnp.zeros((TH * Wout, Cout), jnp.float32)
    for kh in range(K):
        for kw in range(K):
            tap = lax.slice(
                xs,
                (kh, kw, 0),
                (kh + (TH - 1) * stride + 1,
                 kw + (Wout - 1) * stride + 1,
                 Cin),
                (stride, stride, 1),
            )                                            # (TH, Wout, Cin)
            tap2d = tap.reshape(TH * Wout, Cin)
            acc = acc + jnp.dot(tap2d, w_ref[kh * K + kw],
                                preferred_element_type=jnp.float32)

    # Bias + exact (erf) GELU on the f32 accumulator, then store.
    y = acc + b_ref[...]                                 # (TH*Wout, Cout)
    y = 0.5 * y * (1.0 + lax.erf(y * (1.0 / math.sqrt(2.0))))
    o_ref[0] = y.reshape(TH, Wout, Cout).astype(o_ref.dtype)


def _pick_row_block(hout, target):
    th = max(1, min(hout, target))
    while hout % th:
        th -= 1
    return th


def basic_conv(x_nchw, weight, bias, *, kernel_size, stride,
               matmul_dtype=None, row_block=8):
    """BasicConv forward: Conv2d(padding=k//2, stride, bias=True) + GELU.

    x_nchw : (N, Cin, H, W)     (PyTorch layout)
    weight : (Cout, Cin, K, K)
    bias   : (Cout,)
    returns: (N, Cout, Hout, Wout)

    matmul_dtype: set to jnp.bfloat16 on v6e/v7x to halve HBM traffic and use
                  the bf16 MXU rate (f32 accumulation is kept).
    row_block   : target output-row tile; raise toward the VMEM budget for
                  large images (bigger tiles amortize per-step overhead).
    """
    N, Cin, H, W = x_nchw.shape
    Cout = weight.shape[0]
    K = kernel_size
    pad = K // 2
    Hout = (H + 2 * pad - K) // stride + 1
    Wout = (W + 2 * pad - K) // stride + 1
    Hp = H + 2 * pad
    Wp = W + 2 * pad
    TH = _pick_row_block(Hout, row_block)

    # NCHW -> NHWC (channels on the lane axis) + spatial zero-pad.
    # TODO(synk): fold the zero-padding into the kernel via boundary masking to
    # drop one full-tensor HBM round trip; kept in the wrapper for simplicity.
    x_nhwc = jnp.transpose(x_nchw, (0, 2, 3, 1))
    x_pad = jnp.pad(x_nhwc, ((0, 0), (pad, pad), (pad, pad), (0, 0)))

    # (Cout, Cin, K, K) -> (K*K, Cin, Cout), tap-major (kh, kw) order.
    w_taps = jnp.transpose(weight, (2, 3, 1, 0)).reshape(K * K, Cin, Cout)

    if matmul_dtype is not None:
        x_pad = x_pad.astype(matmul_dtype)
        w_taps = w_taps.astype(matmul_dtype)

    b2d = bias.astype(jnp.float32).reshape(1, Cout)

    kernel = partial(_conv_gelu_kernel, K=K, stride=stride, TH=TH, Wout=Wout)

    out_nhwc = pl.pallas_call(
        kernel,
        out_shape=jax.ShapeDtypeStruct((N, Hout, Wout, Cout), x_nchw.dtype),
        grid=(N, Hout // TH),
        in_specs=[
            # Full padded image per batch element; index_map ignores the
            # row-block axis so the block stays resident across row blocks.
            pl.BlockSpec((1, Hp, Wp, Cin), lambda n, h: (n, 0, 0, 0)),
            pl.BlockSpec((K * K, Cin, Cout), lambda n, h: (0, 0, 0)),
            pl.BlockSpec((1, Cout), lambda n, h: (0, 0)),
        ],
        out_specs=pl.BlockSpec((1, TH, Wout, Cout), lambda n, h: (n, h, 0, 0)),
        compiler_params=pltpu.CompilerParams(
            # Batch axis sharded across TensorCores; row blocks sequential so
            # the input block is not re-fetched.
            dimension_semantics=("parallel", "arbitrary"),
            # Safely inside v5e/v6e (128 MiB) and v7x (64 MiB) physical VMEM.
            vmem_limit_bytes=32 * 1024 * 1024,
        ),
    )(x_pad, w_taps, b2d)

    return jnp.transpose(out_nhwc, (0, 3, 1, 2))


def _reference(x_nchw, weight, bias, *, kernel_size, stride):
    """Pure-JAX reference (lax conv + exact GELU) for the correctness check."""
    pad = kernel_size // 2
    y = lax.conv_general_dilated(
        x_nchw, weight,
        window_strides=(stride, stride),
        padding=((pad, pad), (pad, pad)),
        dimension_numbers=("NCHW", "OIHW", "NCHW"),
    )
    y = y + bias.reshape(1, -1, 1, 1)
    return 0.5 * y * (1.0 + lax.erf(y / math.sqrt(2.0)))


if __name__ == "__main__":
    # BasicConv(dim=4, out_channel=8, kernel_size=3, stride=1,
    #           bias=True, norm=False, relu=True, transpose=False)
    N, Cin, H, W = 2, 4, 16, 16
    Cout, K, stride = 8, 3, 1

    key = jax.random.PRNGKey(0)
    kx, kw, kb = jax.random.split(key, 3)

    x = jax.random.normal(kx, (N, Cin, H, W), dtype=jnp.float32)
    fan_in = Cin * K * K
    w = jax.random.normal(kw, (Cout, Cin, K, K), dtype=jnp.float32) / math.sqrt(fan_in)
    b = jax.random.normal(kb, (Cout,), dtype=jnp.float32) * 0.1

    fwd = jax.jit(partial(basic_conv, kernel_size=K, stride=stride))
    out = jax.block_until_ready(fwd(x, w, b))

    ref = _reference(x, w, b, kernel_size=K, stride=stride)
    assert out.shape == (N, Cout, H, W), out.shape
    err = float(jnp.max(jnp.abs(out - ref)))
    assert err < 1e-4, f"mismatch vs reference: {err}"

    print("KERNEL_OK")
</pallas_src>

<mosaic_0001>
module attributes {stable_mosaic.version = 11 : i64} {
  func.func @_conv_gelu_kernel(%arg0: i32, %arg1: i32, %arg2: memref<1x18x18x4xf32, #tpu.memory_space<vmem>>, %arg3: memref<9x4x8xf32, #tpu.memory_space<vmem>>, %arg4: memref<1x8xf32, #tpu.memory_space<vmem>>, %arg5: memref<1x8x16x8xf32, #tpu.memory_space<vmem>>) attributes {dimension_semantics = [#tpu.dimension_semantics<parallel>, #tpu.dimension_semantics<arbitrary>], iteration_bounds = array<i64: 2, 2>, scalar_prefetch = 0 : i64, scratch_operands = 0 : i64, tpu.core_type = #tpu.core_type<tc>, window_params = [{transform_indices = @transform_0, window_bounds = array<i64: 1, 18, 18, 4>}, {pipeline_mode = #tpu.pipeline_mode<synchronous>, transform_indices = @transform_1, window_bounds = array<i64: 9, 4, 8>}, {pipeline_mode = #tpu.pipeline_mode<synchronous>, transform_indices = @transform_2, window_bounds = array<i64: 1, 8>}, {transform_indices = @transform_3, window_bounds = array<i64: 1, 8, 16, 8>}]} {
    %c8_i32 = arith.constant 8 : i32
    %0 = arith.muli %arg1, %c8_i32 : i32
    %1 = tpu.assume_multiple %0, 8 : i32
    %c0 = arith.constant 0 : index
    %2 = arith.index_cast %1 : i32 to index
    %c0_0 = arith.constant 0 : index
    %c0_1 = arith.constant 0 : index
    %3 = vector.load %arg2[%c0, %2, %c0_0, %c0_1] : memref<1x18x18x4xf32, #tpu.memory_space<vmem>>, vector<1x10x18x4xf32>
    %4 = vector.shape_cast %3 : vector<1x10x18x4xf32> to vector<10x18x4xf32>
    %cst = arith.constant 0.000000e+00 : f32
    %5 = vector.broadcast %cst : f32 to vector<128x8xf32>
    %6 = vector.extract_strided_slice %4 {offsets = [0, 0, 0], sizes = [8, 16, 4], strides = [1, 1, 1]} : vector<10x18x4xf32> to vector<8x16x4xf32>
    %7 = vector.shape_cast %6 : vector<8x16x4xf32> to vector<128x4xf32>
    %c0_2 = arith.constant 0 : index
    %c0_3 = arith.constant 0 : index
    %c0_4 = arith.constant 0 : index
    %8 = vector.load %arg3[%c0_2, %c0_3, %c0_4] : memref<9x4x8xf32, #tpu.memory_space<vmem>>, vector<1x4x8xf32>
    %9 = vector.shape_cast %8 : vector<1x4x8xf32> to vector<4x8xf32>
    %cst_5 = arith.constant dense<0.000000e+00> : vector<128x8xf32>
    %10 = tpu.matmul %7, %9, %cst_5 {dimension_numbers = #tpu.dot_dimension_numbers<[1], [0], [0], [1], [0, 0, 1, 1], [], []>} : vector<128x4xf32>, vector<4x8xf32>, vector<128x8xf32> -> vector<128x8xf32>
    %11 = arith.addf %5, %10 : vector<128x8xf32>
    %12 = vector.extract_strided_slice %4 {offsets = [0, 1, 0], sizes = [8, 16, 4], strides = [1, 1, 1]} : vector<10x18x4xf32> to vector<8x16x4xf32>
    %13 = vector.shape_cast %12 : vector<8x16x4xf32> to vector<128x4xf32>
    %c1 = arith.constant 1 : index
    %c0_6 = arith.constant 0 : index
    %c0_7 = arith.constant 0 : index
    %14 = vector.load %arg3[%c1, %c0_6, %c0_7] : memref<9x4x8xf32, #tpu.memory_space<vmem>>, vector<1x4x8xf32>
    %15 = vector.shape_cast %14 : vector<1x4x8xf32> to vector<4x8xf32>
    %cst_8 = arith.constant dense<0.000000e+00> : vector<128x8xf32>
    %16 = tpu.matmul %13, %15, %cst_8 {dimension_numbers = #tpu.dot_dimension_numbers<[1], [0], [0], [1], [0, 0, 1, 1], [], []>} : vector<128x4xf32>, vector<4x8xf32>, vector<128x8xf32> -> vector<128x8xf32>
    %17 = arith.addf %11, %16 : vector<128x8xf32>
    %18 = vector.extract_strided_slice %4 {offsets = [0, 2, 0], sizes = [8, 16, 4], strides = [1, 1, 1]} : vector<10x18x4xf32> to vector<8x16x4xf32>
    %19 = vector.shape_cast %18 : vector<8x16x4xf32> to vector<128x4xf32>
    %c2 = arith.constant 2 : index
    %c0_9 = arith.constant 0 : index
    %c0_10 = arith.constant 0 : index
    %20 = vector.load %arg3[%c2, %c0_9, %c0_10] : memref<9x4x8xf32, #tpu.memory_space<vmem>>, vector<1x4x8xf32>
    %21 = vector.shape_cast %20 : vector<1x4x8xf32> to vector<4x8xf32>
    %cst_11 = arith.constant dense<0.000000e+00> : vector<128x8xf32>
    %22 = tpu.matmul %19, %21, %cst_11 {dimension_numbers = #tpu.dot_dimension_numbers<[1], [0], [0], [1], [0, 0, 1, 1], [], []>} : vector<128x4xf32>, vector<4x8xf32>, vector<128x8xf32> -> vector<128x8xf32>
    %23 = arith.addf %17, %22 : vector<128x8xf32>
    %24 = vector.extract_strided_slice %4 {offsets = [1, 0, 0], sizes = [8, 16, 4], strides = [1, 1, 1]} : vector<10x18x4xf32> to vector<8x16x4xf32>
    %25 = vector.shape_cast %24 : vector<8x16x4xf32> to vector<128x4xf32>
    %c3 = arith.constant 3 : index
    %c0_12 = arith.constant 0 : index
    %c0_13 = arith.constant 0 : index
    %26 = vector.load %arg3[%c3, %c0_12, %c0_13] : memref<9x4x8xf32, #tpu.memory_space<vmem>>, vector<1x4x8xf32>
    %27 = vector.shape_cast %26 : vector<1x4x8xf32> to vector<4x8xf32>
    %cst_14 = arith.constant dense<0.000000e+00> : vector<128x8xf32>
    %28 = tpu.matmul %25, %27, %cst_14 {dimension_numbers = #tpu.dot_dimension_numbers<[1], [0], [0], [1], [0, 0, 1, 1], [], []>} : vector<128x4xf32>, vector<4x8xf32>, vector<128x8xf32> -> vector<128x8xf32>
    %29 = arith.addf %23, %28 : vector<128x8xf32>
    %30 = vector.extract_strided_slice %4 {offsets = [1, 1, 0], sizes = [8, 16, 4], strides = [1, 1, 1]} : vector<10x18x4xf32> to vector<8x16x4xf32>
    %31 = vector.shape_cast %30 : vector<8x16x4xf32> to vector<128x4xf32>
    %c4 = arith.constant 4 : index
    %c0_15 = arith.constant 0 : index
    %c0_16 = arith.constant 0 : index
    %32 = vector.load %arg3[%c4, %c0_15, %c0_16] : memref<9x4x8xf32, #tpu.memory_space<vmem>>, vector<1x4x8xf32>
    %33 = vector.shape_cast %32 : vector<1x4x8xf32> to vector<4x8xf32>
    %cst_17 = arith.constant dense<0.000000e+00> : vector<128x8xf32>
    %34 = tpu.matmul %31, %33, %cst_17 {dimension_numbers = #tpu.dot_dimension_numbers<[1], [0], [0], [1], [0, 0, 1, 1], [], []>} : vector<128x4xf32>, vector<4x8xf32>, vector<128x8xf32> -> vector<128x8xf32>
    %35 = arith.addf %29, %34 : vector<128x8xf32>
    %36 = vector.extract_strided_slice %4 {offsets = [1, 2, 0], sizes = [8, 16, 4], strides = [1, 1, 1]} : vector<10x18x4xf32> to vector<8x16x4xf32>
    %37 = vector.shape_cast %36 : vector<8x16x4xf32> to vector<128x4xf32>
    %c5 = arith.constant 5 : index
    %c0_18 = arith.constant 0 : index
    %c0_19 = arith.constant 0 : index
    %38 = vector.load %arg3[%c5, %c0_18, %c0_19] : memref<9x4x8xf32, #tpu.memory_space<vmem>>, vector<1x4x8xf32>
    %39 = vector.shape_cast %38 : vector<1x4x8xf32> to vector<4x8xf32>
    %cst_20 = arith.constant dense<0.000000e+00> : vector<128x8xf32>
    %40 = tpu.matmul %37, %39, %cst_20 {dimension_numbers = #tpu.dot_dimension_numbers<[1], [0], [0], [1], [0, 0, 1, 1], [], []>} : vector<128x4xf32>, vector<4x8xf32>, vector<128x8xf32> -> vector<128x8xf32>
    %41 = arith.addf %35, %40 : vector<128x8xf32>
    %42 = vector.extract_strided_slice %4 {offsets = [2, 0, 0], sizes = [8, 16, 4], strides = [1, 1, 1]} : vector<10x18x4xf32> to vector<8x16x4xf32>
    %43 = vector.shape_cast %42 : vector<8x16x4xf32> to vector<128x4xf32>
    %c6 = arith.constant 6 : index
    %c0_21 = arith.constant 0 : index
    %c0_22 = arith.constant 0 : index
    %44 = vector.load %arg3[%c6, %c0_21, %c0_22] : memref<9x4x8xf32, #tpu.memory_space<vmem>>, vector<1x4x8xf32>
    %45 = vector.shape_cast %44 : vector<1x4x8xf32> to vector<4x8xf32>
    %cst_23 = arith.constant dense<0.000000e+00> : vector<128x8xf32>
    %46 = tpu.matmul %43, %45, %cst_23 {dimension_numbers = #tpu.dot_dimension_numbers<[1], [0], [0], [1], [0, 0, 1, 1], [], []>} : vector<128x4xf32>, vector<4x8xf32>, vector<128x8xf32> -> vector<128x8xf32>
    %47 = arith.addf %41, %46 : vector<128x8xf32>
    %48 = vector.extract_strided_slice %4 {offsets = [2, 1, 0], sizes = [8, 16, 4], strides = [1, 1, 1]} : vector<10x18x4xf32> to vector<8x16x4xf32>
    %49 = vector.shape_cast %48 : vector<8x16x4xf32> to vector<128x4xf32>
    %c7 = arith.constant 7 : index
    %c0_24 = arith.constant 0 : index
    %c0_25 = arith.constant 0 : index
    %50 = vector.load %arg3[%c7, %c0_24, %c0_25] : memref<9x4x8xf32, #tpu.memory_space<vmem>>, vector<1x4x8xf32>
    %51 = vector.shape_cast %50 : vector<1x4x8xf32> to vector<4x8xf32>
    %cst_26 = arith.constant dense<0.000000e+00> : vector<128x8xf32>
    %52 = tpu.matmul %49, %51, %cst_26 {dimension_numbers = #tpu.dot_dimension_numbers<[1], [0], [0], [1], [0, 0, 1, 1], [], []>} : vector<128x4xf32>, vector<4x8xf32>, vector<128x8xf32> -> vector<128x8xf32>
    %53 = arith.addf %47, %52 : vector<128x8xf32>
    %54 = vector.extract_strided_slice %4 {offsets = [2, 2, 0], sizes = [8, 16, 4], strides = [1, 1, 1]} : vector<10x18x4xf32> to vector<8x16x4xf32>
    %55 = vector.shape_cast %54 : vector<8x16x4xf32> to vector<128x4xf32>
    %c8 = arith.constant 8 : index
    %c0_27 = arith.constant 0 : index
    %c0_28 = arith.constant 0 : index
    %56 = vector.load %arg3[%c8, %c0_27, %c0_28] : memref<9x4x8xf32, #tpu.memory_space<vmem>>, vector<1x4x8xf32>
    %57 = vector.shape_cast %56 : vector<1x4x8xf32> to vector<4x8xf32>
    %cst_29 = arith.constant dense<0.000000e+00> : vector<128x8xf32>
    %58 = tpu.matmul %55, %57, %cst_29 {dimension_numbers = #tpu.dot_dimension_numbers<[1], [0], [0], [1], [0, 0, 1, 1], [], []>} : vector<128x4xf32>, vector<4x8xf32>, vector<128x8xf32> -> vector<128x8xf32>
    %59 = arith.addf %53, %58 : vector<128x8xf32>
    %c0_30 = arith.constant 0 : index
    %c0_31 = arith.constant 0 : index
    %60 = vector.load %arg4[%c0_30, %c0_31] : memref<1x8xf32, #tpu.memory_space<vmem>>, vector<1x8xf32>
    %61 = vector.broadcast %60 : vector<1x8xf32> to vector<128x8xf32>
    %62 = arith.addf %59, %61 : vector<128x8xf32>
    %cst_32 = arith.constant 5.000000e-01 : f32
    %63 = vector.broadcast %cst_32 : f32 to vector<128x8xf32>
    %64 = arith.mulf %63, %62 : vector<128x8xf32>
    %cst_33 = arith.constant 0.707106769 : f32
    %65 = vector.broadcast %cst_33 : f32 to vector<128x8xf32>
    %66 = arith.mulf %62, %65 : vector<128x8xf32>
    %67 = math.erf %66 : vector<128x8xf32>
    %cst_34 = arith.constant 1.000000e+00 : f32
    %68 = vector.broadcast %cst_34 : f32 to vector<128x8xf32>
    %69 = arith.addf %68, %67 : vector<128x8xf32>
    %70 = arith.mulf %64, %69 : vector<128x8xf32>
    %71 = vector.shape_cast %70 : vector<128x8xf32> to vector<8x16x8xf32>
    %c0_35 = arith.constant 0 : index
    %c0_36 = arith.constant 0 : index
    %c0_37 = arith.constant 0 : index
    %c0_38 = arith.constant 0 : index
    %72 = vector.load %arg5[%c0_35, %c0_36, %c0_37, %c0_38] : memref<1x8x16x8xf32, #tpu.memory_space<vmem>>, vector<1x8x16x8xf32>
    %73 = vector.shape_cast %72 : vector<1x8x16x8xf32> to vector<8x16x8xf32>
    %74 = vector.shape_cast %71 : vector<8x16x8xf32> to vector<1x8x16x8xf32>
    tpu.vector_store %arg5[%c0_35, %c0_36, %c0_37, %c0_38], %74 {strides = array<i32>} : memref<1x8x16x8xf32, #tpu.memory_space<vmem>>, vector<1x8x16x8xf32>,
    return
  }
  func.func @transform_0(%arg0: i32, %arg1: i32) -> (i32, i32, i32, i32) {
    %c0_i32 = arith.constant 0 : i32
    %c0_i32_0 = arith.constant 0 : i32
    %c0_i32_1 = arith.constant 0 : i32
    %c0_i32_2 = arith.constant 0 : i32
    return %arg0, %c0_i32, %c0_i32_0, %c0_i32_1 : i32, i32, i32, i32
  }
  func.func @transform_1(%arg0: i32, %arg1: i32) -> (i32, i32, i32) {
    %c0_i32 = arith.constant 0 : i32
    %c0_i32_0 = arith.constant 0 : i32
    %c0_i32_1 = arith.constant 0 : i32
    %c0_i32_2 = arith.constant 0 : i32
    return %c0_i32, %c0_i32_0, %c0_i32_1 : i32, i32, i32
  }
  func.func @transform_2(%arg0: i32, %arg1: i32) -> (i32, i32) {
    %c0_i32 = arith.constant 0 : i32
    %c0_i32_0 = arith.constant 0 : i32
    %c0_i32_1 = arith.constant 0 : i32
    return %c0_i32, %c0_i32_0 : i32, i32
  }
  func.func @transform_3(%arg0: i32, %arg1: i32) -> (i32, i32, i32, i32) {
    %c0_i32 = arith.constant 0 : i32
    %c0_i32_0 = arith.constant 0 : i32
    %c0_i32_1 = arith.constant 0 : i32
    return %arg0, %arg1, %c0_i32, %c0_i32_0 : i32, i32, i32, i32
  }
}

</mosaic_0001>

<llo_original>
// kernel: basic_conv.1
$region0: #{basic_conv.1}
  #allocation0 [shape = 'u32[]', space=smem, size = 0x4, offset = 0x4, fixed_abs, tag = 'smem constant byte address 0x4 - core index']
  #allocation1 [shape = 'u32[144,128]{1,0:T(1,128)}', space=vmem, size = 0x12000, scoped, tag = 'internal scratch']
  %s0 = inlined_call_operand.vmem [shape: f32[2,18,18,4], index: 0, kind: input, shape index: {}]
  %s1 = inlined_call_operand.vmem [shape: f32[9,4,8], index: 1, kind: input, shape index: {}]
  %s2 = inlined_call_operand.vmem [shape: f32[1,8], index: 2, kind: input, shape index: {}]
  %s3 = inlined_call_operand.vmem [shape: f32[2,16,16,8], index: 3, kind: output, shape index: {}]
  %s4 = sld [smem:[#allocation0]]
  $region45: #{basic_conv.1} parent=0
    _
  %s6 = ssub.s32 1, %s4
  %s7 = scalar_select 0, %s6, %s4
  loop: start=0, step=1, limit=6
  $region2: #{basic_conv.1} parent=0 // loop_pre_header
    _
  $region3: #{basic_conv.1} parent=0 // loop_header
    %s9 = sphi 0, %s13
    %p10 = scmp.ge.s32.totalorder %s9, 6
    %s16 = sphi 0, %s28
    %s17 = sphi 0, %s24
    %s18 = sphi 0, %s16
    %s19 = sphi 0, %s17
    %s20 = sphi 0, %s18
    %s21 = sphi 0, %s19
    %s31 = sphi 0, %s33
    %s34 = sphi 0, %s31
    %s35 = sphi 0, %s34
    %s51 = sphi 0, %s35
    %s55 = sphi 0, %s55
    %s57 = sphi 0, %s55
    %s58 = sphi 0, %s57
    %s72 = sphi 0, %s58
    %s76 = sphi 0, %s76
    %s78 = sphi 0, %s76
    %s79 = sphi 0, %s78
    %s93 = sphi 0, %s79
    %s101 = sphi 0, %s103
    %s104 = sphi 0, %s101
    %s105 = sphi 0, %s104
    %s121 = sphi 0, %s105
  $region4: #{basic_conv.1} parent=0 // loop_header_branch
    %12 = sbr.rel (%p10) target = $region8
  $region5: #{basic_conv.1} parent=0 // loop_body
    %s14 = ssub.s32 %s9, 1
    %s15 = ssub.s32 %s9, 2
    %s22 = sadd.s32 1, %s17
    %p23 = scmp.ge.s32.totalorder %s22, 2
    %s24 = scalar_select %p23, 0, %s22
    %s25 = sadd.s32 1, %s16
    %s26 = scalar_select %p23, %s25, %s16
    %p27 = scmp.ge.s32.totalorder %s26, 2
    %s28 = scalar_select %p27, 0, %s26
    %s29 = ssub.s32 %s16, %s28
    %p30 = scmp.eq.s32.totalorder %s29, 0
    %s32 = sadd.s32 %s31, 1
    %s33 = scalar_select %p30, %s31, %s32
    %p36 = pneg %p30
    %p37 = scmp.eq.s32.totalorder %s9, 3
    %p38 = por %p36, %p37
    %p39 = scmp.ne.s32.totalorder %s31, %s34
    %p40 = scmp.eq.s32.totalorder %s9, 0
    %p41 = por %p39, %p40
    %p42 = scmp.ne.s32.totalorder %s31, %s34
    %p43 = scmp.eq.s32.totalorder %s14, 3
    %p44 = por %p42, %p43
    %p45 = scmp.ne.s32.totalorder %s34, %s35
    %p46 = scmp.eq.s32.totalorder %s14, 0
    %p47 = por %p45, %p46
    %p48 = scmp.ne.s32.totalorder %s34, %s35
    %p49 = scmp.eq.s32.totalorder %s15, 3
    %p50 = por %p48, %p49
    %p52 = scmp.ne.s32.totalorder %s35, %s51
    %p53 = scmp.eq.s32.totalorder %s15, 0
    %p54 = por %p52, %p53
    %s56 = sadd.s32 %s55, 1
    %p59 = scmp.eq.s32.totalorder %s9, 3
    %p60 = scmp.ne.s32.totalorder %s55, %s57
    %p61 = scmp.eq.s32.totalorder %s9, 0
    %p62 = por %p60, %p61
    %p63 = scmp.ne.s32.totalorder %s55, %s57
    %p64 = scmp.eq.s32.totalorder %s14, 3
    %p65 = por %p63, %p64
    %p66 = scmp.ne.s32.totalorder %s57, %s58
    %p67 = scmp.eq.s32.totalorder %s14, 0
    %p68 = por %p66, %p67
    %p69 = scmp.ne.s32.totalorder %s57, %s58
    %p70 = scmp.eq.s32.totalorder %s15, 3
    %p71 = por %p69, %p70
    %p73 = scmp.ne.s32.totalorder %s58, %s72
    %p74 = scmp.eq.s32.totalorder %s15, 0
    %p75 = por %p73, %p74
    %s77 = sadd.s32 %s76, 1
    %p80 = scmp.eq.s32.totalorder %s9, 3
    %p81 = scmp.ne.s32.totalorder %s76, %s78
    %p82 = scmp.eq.s32.totalorder %s9, 0
    %p83 = por %p81, %p82
    %p84 = scmp.ne.s32.totalorder %s76, %s78
    %p85 = scmp.eq.s32.totalorder %s14, 3
    %p86 = por %p84, %p85
    %p87 = scmp.ne.s32.totalorder %s78, %s79
    %p88 = scmp.eq.s32.totalorder %s14, 0
    %p89 = por %p87, %p88
    %p90 = scmp.ne.s32.totalorder %s78, %s79
    %p91 = scmp.eq.s32.totalorder %s15, 3
    %p92 = por %p90, %p91
    %p94 = scmp.ne.s32.totalorder %s79, %s93
    %p95 = scmp.eq.s32.totalorder %s15, 0
    %p96 = por %p94, %p95
    %s97 = ssub.s32 %s16, %s28
    %s98 = ssub.s32 %s17, %s24
    %s99 = sor.u32 %s97, %s98
    %p100 = scmp.eq.s32.totalorder %s99, 0
    %s102 = sadd.s32 %s101, 1
    %s103 = scalar_select %p100, %s101, %s102
    %p106 = pneg %p100
    %p107 = scmp.eq.s32.totalorder %s9, 3
    %p108 = por %p106, %p107
    %p109 = scmp.ne.s32.totalorder %s101, %s104
    %p110 = scmp.eq.s32.totalorder %s9, 0
    %p111 = por %p109, %p110
    %p112 = scmp.ne.s32.totalorder %s101, %s104
    %p113 = scmp.eq.s32.totalorder %s14, 3
    %p114 = por %p112, %p113
    %p115 = scmp.ne.s32.totalorder %s104, %s105
    %p116 = scmp.eq.s32.totalorder %s14, 0
    %p117 = por %p115, %p116
    %p118 = scmp.ne.s32.totalorder %s104, %s105
    %p119 = scmp.eq.s32.totalorder %s15, 3
    %p120 = por %p118, %p119
    %p122 = scmp.ne.s32.totalorder %s105, %s121
    %p123 = scmp.eq.s32.totalorder %s15, 0
    %p124 = por %p122, %p123
    %p125 = scmp.le.s32.totalorder 1, %s9
    %p126 = scmp.lt.s32.totalorder %s9, 5
    %p127 = pnand %p125, %p126
    %p128 = pneg %p127
    // Predicated region
    $region9: #{basic_conv.1} parent=5 // pred_check
      _
    $region10: #{basic_conv.1} parent=5 // pred_check_branch
      %130 = sbr.rel (%p127) target = $region12
    $region11: #{basic_conv.1} parent=5 // pred_region
      %s131 = ssub.s32 %s9, 1
      // Predicated region
      $region13: #{basic_conv.1} parent=11 // pred_check
        %p132 = pneg %p68
      $region14: #{basic_conv.1} parent=11 // pred_check_branch
        %134 = sbr.rel (%p132) target = $region16
      $region15: #{basic_conv.1} parent=11 // pred_region
        _
      $region16: #{basic_conv.1} parent=11 // pred_fallthru
        _
      // Predicated region
      $region17: #{basic_conv.1} parent=11 // pred_check
        %p135 = pneg %p89
      $region18: #{basic_conv.1} parent=11 // pred_check_branch
        %137 = sbr.rel (%p135) target = $region20
      $region19: #{basic_conv.1} parent=11 // pred_region
        _
      $region20: #{basic_conv.1} parent=11 // pred_fallthru
        _
    $region12: #{basic_conv.1} parent=5 // pred_fallthru
      _
    %p138 = scmp.lt.s32.totalorder %s9, 4
    // Predicated region
    $region21: #{basic_conv.1} parent=5 // pred_check
      %p139 = pneg %p138
    $region22: #{basic_conv.1} parent=5 // pred_check_branch
      %141 = sbr.rel (%p139) target = $region24
    $region23: #{basic_conv.1} parent=5 // pred_region
      // Predicated region
      $region25: #{basic_conv.1} parent=23 // pred_check
        %p142 = pneg %p41
      $region26: #{basic_conv.1} parent=23 // pred_check_branch
        %144 = sbr.rel (%p142) target = $region28
      $region27: #{basic_conv.1} parent=23 // pred_region
        %p145 = scmp.lt.s32.totalorder %s16, 1
        %s146 = scalar_select %p145, %s16, 1
        %s147 = smul.addr %s146, 54
        %s148 = smul.addr %s147, 8
        %s149 = scalar_lea.vmem %s0, %s148
      $region28: #{basic_conv.1} parent=23 // pred_fallthru
        _
    $region24: #{basic_conv.1} parent=5 // pred_fallthru
      _
    %p150 = scmp.le.s32.totalorder 1, %s9
    %p151 = scmp.lt.s32.totalorder %s9, 5
    %p152 = pnand %p150, %p151
    %p153 = pneg %p152
    // Predicated region
    $region29: #{basic_conv.1} parent=5 // pred_check
      _
    $region30: #{basic_conv.1} parent=5 // pred_check_branch
      %155 = sbr.rel (%p152) target = $region32
    $region31: #{basic_conv.1} parent=5 // pred_region
      %s156 = ssub.s32 %s9, 1
      %p157 = scmp.lt.s32.totalorder %s18, 1
      %s158 = scalar_select %p157, %s18, 1
      %s159 = smul.addr %s158, 54
      %s160 = smul.addr %s159, 8
      %s161 = scalar_lea.vmem %s0, %s160
      %p162 = pneg %p47
      %p163 = pneg %p44
      %p164 = pneg %p68
      %p165 = pneg %p65
      %p166 = pneg %p89
      %p167 = pneg %p86
      %p168 = pneg %p117
      %p169 = pneg %p114
      %s170 = smul.u32 8, %s19
      %p171 = scmp.lt.s32.totalorder %s18, 1
      %s172 = scalar_select %p171, %s18, 1
      %p173 = scmp.lt.s32.totalorder %s170, 15
      %s174 = scalar_select %p173, %s170, 15
      %s175 = smul.addr %s174, 2
      %s176 = smul.addr %s172, 32
      %s177 = sadd.s32 %s175, %s176
      %s178 = smul.addr %s177, 8
      %s179 = scalar_lea.vmem %s3, %s178
      %p180 = scmp.lt.s32.totalorder %s18, 1
      %s181 = scalar_select %p180, %s18, 1
      %s182 = smul.addr %s181, 54
      %s183 = smul.addr %s182, 8
      %s184 = scalar_lea.vmem %s0, %s183
      %s185 = smul.u32 8, %s19
      %p186 = scmp.lt.s32.totalorder %s18, 1
      %s187 = scalar_select %p186, %s18, 1
      %p188 = scmp.lt.s32.totalorder %s185, 15
      %s189 = scalar_select %p188, %s185, 15
      %s190 = smul.addr %s189, 2
      %s191 = smul.addr %s187, 32
      %s192 = sadd.s32 %s190, %s191
      %s193 = smul.addr %s192, 8
      %s194 = scalar_lea.vmem %s3, %s193
      %s195 = smul.u32 8, %s19
      %s196 = smul.u32 %s19, 8
      %s197 = smul.u32 %s196, 24
      %s198 = scalar_lea.vmem %s184, %s197
      %v199 = vld [vmem:[%s198] sm:$0xff]
      %v200 = vld [vmem:[%s198 + $0x8] sm:$0xff]
      %v201 = vld [vmem:[%s198 + $0x10] sm:$0x3]
      %v202 = vld [vmem:[%s198 + $0x18] sm:$0xff]
      %v203 = vld [vmem:[%s198 + $0x20] sm:$0xff]
      %v204 = vld [vmem:[%s198 + $0x28] sm:$0x3]
      %v205 = vld [vmem:[%s198 + $0x30] sm:$0xff]
      %v206 = vld [vmem:[%s198 + $0x38] sm:$0xff]
      %v207 = vld [vmem:[%s198 + $0x40] sm:$0x3]
      %v208 = vld [vmem:[%s198 + $0x48] sm:$0xff]
      %v209 = vld [vmem:[%s198 + $0x50] sm:$0xff]
      %v210 = vld [vmem:[%s198 + $0x58] sm:$0x3]
      %v211 = vld [vmem:[%s198 + $0x60] sm:$0xff]
      %v212 = vld [vmem:[%s198 + $0x68] sm:$0xff]
      %v213 = vld [vmem:[%s198 + $0x70] sm:$0x3]
      %v214 = vld [vmem:[%s198 + $0x78] sm:$0xff]
      %v215 = vld [vmem:[%s198 + $0x80] sm:$0xff]
      %v216 = vld [vmem:[%s198 + $0x88] sm:$0x3]
      %v217 = vld [vmem:[%s198 + $0x90] sm:$0xff]
      %v218 = vld [vmem:[%s198 + $0x98] sm:$0xff]
      %v219 = vld [vmem:[%s198 + $0xa0] sm:$0x3]
      %v220 = vld [vmem:[%s198 + $0xa8] sm:$0xff]
      %v221 = vld [vmem:[%s198 + $0xb0] sm:$0xff]
      %v222 = vld [vmem:[%s198 + $0xb8] sm:$0x3]
      %v223 = vld [vmem:[%s198 + $0xc0] sm:$0xff]
      %v224 = vld [vmem:[%s198 + $0xc8] sm:$0xff]
      %v225 = vld [vmem:[%s198 + $0xd0] sm:$0x3]
      %v226 = vld [vmem:[%s198 + $0xd8] sm:$0xff]
      %v227 = vld [vmem:[%s198 + $0xe0] sm:$0xff]
      %v228 = vld [vmem:[%s198 + $0xe8] sm:$0x3]
      %v229 = vld [vmem:[%s1] sm:$0xf]
      %vm254 = vcmask 1046528
      %v255 = vrot.slane %v199, 1
      %v256 = vrot.slane %v200, 1
      %v257 = vsel %vm254, %v255, %v256
      %v258 = vrot.slane %v201, 1
      %v259 = vsel %vm254, %v256, %v258
      %v260 = vrot.slane %v202, 1
      %v261 = vrot.slane %v203, 1
      %v262 = vsel %vm254, %v260, %v261
      %v263 = vrot.slane %v204, 1
      %v264 = vsel %vm254, %v261, %v263
      %v265 = vrot.slane %v205, 1
      %v266 = vrot.slane %v206, 1
      %v267 = vsel %vm254, %v265, %v266
      %v268 = vrot.slane %v207, 1
      %v269 = vsel %vm254, %v266, %v268
      %v270 = vrot.slane %v208, 1
      %v271 = vrot.slane %v209, 1
      %v272 = vsel %vm254, %v270, %v271
      %v273 = vrot.slane %v210, 1
      %v274 = vsel %vm254, %v271, %v273
      %v275 = vrot.slane %v211, 1
      %v276 = vrot.slane %v212, 1
      %v277 = vsel %vm254, %v275, %v276
      %v278 = vrot.slane %v213, 1
      %v279 = vsel %vm254, %v276, %v278
      %v280 = vrot.slane %v214, 1
      %v281 = vrot.slane %v215, 1
      %v282 = vsel %vm254, %v280, %v281
      %v283 = vrot.slane %v216, 1
      %v284 = vsel %vm254, %v281, %v283
      %v285 = vrot.slane %v217, 1
      %v286 = vrot.slane %v218, 1
      %v287 = vsel %vm254, %v285, %v286
      %v288 = vrot.slane %v219, 1
      %v289 = vsel %vm254, %v286, %v288
      %v290 = vrot.slane %v220, 1
      %v291 = vrot.slane %v221, 1
      %v292 = vsel %vm254, %v290, %v291
      %v293 = vrot.slane %v222, 1
      %v294 = vsel %vm254, %v291, %v293
      %s295 = scalar_lea.vmem %s1, 4
      %v296 = vld [vmem:[%s295] sm:$0xf]
      %vm297 = vcmask 31744
      %v298 = vsel %vm297, %v257, 0
      %v300 = vsel %vm297, %v259, 0
      %v302 = vsel %vm297, %v262, 0
      %v304 = vsel %vm297, %v264, 0
      %v306 = vsel %vm297, %v267, 0
      %v308 = vsel %vm297, %v269, 0
      %v310 = vsel %vm297, %v272, 0
      %v312 = vsel %vm297, %v274, 0
      %v314 = vsel %vm297, %v277, 0
      %v316 = vsel %vm297, %v279, 0
      %v318 = vsel %vm297, %v282, 0
      %v320 = vsel %vm297, %v284, 0
      %v322 = vsel %vm297, %v287, 0
      %v324 = vsel %vm297, %v289, 0
      %v326 = vsel %vm297, %v292, 0
      %v328 = vsel %vm297, %v294, 0
      %vm330 = vcmask 1043456
      %v332 = vsel %vm330, %v296, 0
      %334 = vmatprep.subr.mxu0 0.0
      %335 = vmatpush1.msra.mxu0 %v332
      %336 = vmatprep.subr.mxu0 0.0
      %337 = vmatpush1.msra.mxu0 0.0
      %338 = vmatprep.subr.mxu0 0.0
      %339 = vmatpush1.msra.mxu0 0.0
      %340 = vmatprep.subr.mxu0 0.0
      %341 = vmatpush1.msra.mxu0 0.0
      %342 = vmatprep.subr.mxu0 0.0
      %343 = vmatpush1.msra.mxu0 0.0
      %344 = vmatprep.subr.mxu0 0.0
      %345 = vmatpush1.msra.mxu0 0.0
      %346 = vmatprep.subr.mxu0 0.0
      %347 = vmatpush1.msra.mxu0 0.0
      %348 = vmatprep.subr.mxu0 0.0
      %349 = vmatpush1.msra.mxu0 0.0
      %350 = vmatprep.subr.mxu0 0.0
      %351 = vmatpush1.msra.mxu0 0.0
      %352 = vmatprep.subr.mxu0 0.0
      %353 = vmatpush1.msra.mxu0 0.0
      %354 = vmatprep.subr.mxu0 0.0
      %355 = vmatpush1.msra.mxu0 0.0
      %356 = vmatprep.subr.mxu0 0.0
      %357 = vmatpush1.msra.mxu0 0.0
      %358 = vmatprep.subr.mxu0 0.0
      %359 = vmatpush1.msra.mxu0 0.0
      %360 = vmatprep.subr.mxu0 0.0
      %361 = vmatpush1.msra.mxu0 0.0
      %362 = vmatprep.subr.mxu0 0.0
      %363 = vmatpush1.msra.mxu0 0.0
      %364 = vmatprep.subr.mxu0 0.0
      %365 = vmatpush1.msra.mxu0 0.0
      %366 = vmatprep.subr.mxu0 0.0
      %367 = vmatpush1.msra.mxu0 0.0
      %368 = vmatprep.subr.mxu0 0.0
      %369 = vmatpush1.msra.mxu0 0.0
      %370 = vmatprep.subr.mxu0 0.0
      %371 = vmatpush1.msra.mxu0 0.0
      %372 = vmatprep.subr.mxu0 0.0
      %373 = vmatpush1.msra.mxu0 0.0
      %374 = vmatprep.subr.mxu0 0.0
      %375 = vmatpush1.msra.mxu0 0.0
      %376 = vmatprep.subr.mxu0 0.0
      %377 = vmatpush1.msra.mxu0 0.0
      %378 = vmatprep.subr.mxu0 0.0
      %379 = vmatpush1.msra.mxu0 0.0
      %380 = vmatprep.subr.mxu0 0.0
      %381 = vmatpush1.msra.mxu0 0.0
      %382 = vmatprep.subr.mxu0 0.0
      %383 = vmatpush1.msra.mxu0 0.0
      %384 = vmatprep.subr.mxu0 0.0
      %385 = vmatpush1.msra.mxu0 0.0
      %386 = vmatprep.subr.mxu0 0.0
      %387 = vmatpush1.msra.mxu0 0.0
      %388 = vmatprep.subr.mxu0 0.0
      %389 = vmatpush1.msra.mxu0 0.0
      %390 = vmatprep.subr.mxu0 0.0
      %391 = vmatpush1.msra.mxu0 0.0
      %392 = vmatprep.subr.mxu0 0.0
      %393 = vmatpush1.msra.mxu0 0.0
      %394 = vmatprep.subr.mxu0 0.0
      %395 = vmatpush1.msra.mxu0 0.0
      %396 = vmatprep.subr.mxu0 0.0
      %397 = vmatpush1.msra.mxu0 0.0
      %398 = vmatprep.mubr.f32.mxu0 0.0
      %399 = vmatmul.mubr.f32.gmra.mrb[0].mxu0 %v298
      %v400 = vpop.f32.mrb[0].mxu0
      %v401 = vadd.f32 0.0, %v400
      %v402 = vpop.f32.mrb[0].mxu0
      %403 = vmatprep.mubr.f32.mxu0 0.0
      %404 = vmatmul.mubr.f32.gmra.mrb[0].mxu0 %v300
      %v405 = vpop.f32.mrb[0].mxu0
      %v406 = vadd.f32 0.0, %v405
      %v407 = vpop.f32.mrb[0].mxu0
      %408 = vmatprep.mubr.f32.mxu0 0.0
      %409 = vmatmul.mubr.f32.gmra.mrb[0].mxu0 %v302
      %v410 = vpop.f32.mrb[0].mxu0
      %v411 = vadd.f32 0.0, %v410
      %v412 = vpop.f32.mrb[0].mxu0
      %413 = vmatprep.mubr.f32.mxu0 0.0
      %414 = vmatmul.mubr.f32.gmra.mrb[0].mxu0 %v304
      %v415 = vpop.f32.mrb[0].mxu0
      %v416 = vadd.f32 0.0, %v415
      %v417 = vpop.f32.mrb[0].mxu0
      %418 = vmatprep.mubr.f32.mxu0 0.0
      %419 = vmatmul.mubr.f32.gmra.mrb[0].mxu0 %v306
      %v420 = vpop.f32.mrb[0].mxu0
      %v421 = vadd.f32 0.0, %v420
      %v422 = vpop.f32.mrb[0].mxu0
      %423 = vmatprep.mubr.f32.mxu0 0.0
      %424 = vmatmul.mubr.f32.gmra.mrb[0].mxu0 %v308
      %v425 = vpop.f32.mrb[0].mxu0
      %v426 = vadd.f32 0.0, %v425
      %v427 = vpop.f32.mrb[0].mxu0
      %428 = vmatprep.mubr.f32.mxu0 0.0
      %429 = vmatmul.mubr.f32.gmra.mrb[0].mxu0 %v310
      %v430 = vpop.f32.mrb[0].mxu0
      %v431 = vadd.f32 0.0, %v430
      %v432 = vpop.f32.mrb[0].mxu0
      %433 = vmatprep.mubr.f32.mxu0 0.0
      %434 = vmatmul.mubr.f32.gmra.mrb[0].mxu0 %v312
      %v435 = vpop.f32.mrb[0].mxu0
      %v436 = vadd.f32 0.0, %v435
      %v437 = vpop.f32.mrb[0].mxu0
      %438 = vmatprep.mubr.f32.mxu0 0.0
      %439 = vmatmul.mubr.f32.gmra.mrb[0].mxu0 %v314
      %v440 = vpop.f32.mrb[0].mxu0
      %v441 = vadd.f32 0.0, %v440
      %v442 = vpop.f32.mrb[0].mxu0
      %443 = vmatprep.mubr.f32.mxu0 0.0
      %444 = vmatmul.mubr.f32.gmra.mrb[0].mxu0 %v316
      %v445 = vpop.f32.mrb[0].mxu0
      %v446 = vadd.f32 0.0, %v445
      %v447 = vpop.f32.mrb[0].mxu0
      %448 = vmatprep.mubr.f32.mxu0 0.0
      %449 = vmatmul.mubr.f32.gmra.mrb[0].mxu0 %v318
      %v450 = vpop.f32.mrb[0].mxu0
      %v451 = vadd.f32 0.0, %v450
      %v452 = vpop.f32.mrb[0].mxu0
      %453 = vmatprep.mubr.f32.mxu0 0.0
      %454 = vmatmul.mubr.f32.gmra.mrb[0].mxu0 %v320
      %v455 = vpop.f32.mrb[0].mxu0
      %v456 = vadd.f32 0.0, %v455
      %v457 = vpop.f32.mrb[0].mxu0
      %458 = vmatprep.mubr.f32.mxu0 0.0
      %459 = vmatmul.mubr.f32.gmra.mrb[0].mxu0 %v322
      %v460 = vpop.f32.mrb[0].mxu0
      %v461 = vadd.f32 0.0, %v460
      %v462 = vpop.f32.mrb[0].mxu0
      %463 = vmatprep.mubr.f32.mxu0 0.0
      %464 = vmatmul.mubr.f32.gmra.mrb[0].mxu0 %v324
      %v465 = vpop.f32.mrb[0].mxu0
      %v466 = vadd.f32 0.0, %v465
      %v467 = vpop.f32.mrb[0].mxu0
      %468 = vmatprep.mubr.f32.mxu0 0.0
      %469 = vmatmul.mubr.f32.gmra.mrb[0].mxu0 %v326
      %v470 = vpop.f32.mrb[0].mxu0
      %v471 = vadd.f32 0.0, %v470
      %v472 = vpop.f32.mrb[0].mxu0
      %473 = vmatprep.mubr.f32.mxu0 0.0
      %474 = vmatmul.mubr.f32.gmra.mrb[0].mxu0 %v328
      %v475 = vpop.f32.mrb[0].mxu0
      %v476 = vadd.f32 0.0, %v475
      %v477 = vpop.f32.mrb[0].mxu0
      %478 = vdwg.mxu0
      %v479 = vsel %vm297, %v199, 0
      %v481 = vsel %vm297, %v200, 0
      %v483 = vsel %vm297, %v202, 0
      %v485 = vsel %vm297, %v203, 0
      %v487 = vsel %vm297, %v205, 0
      %v489 = vsel %vm297, %v206, 0
      %v491 = vsel %vm297, %v208, 0
      %v493 = vsel %vm297, %v209, 0
      %v495 = vsel %vm297, %v211, 0
      %v497 = vsel %vm297, %v212, 0
      %v499 = vsel %vm297, %v214, 0
      %v501 = vsel %vm297, %v215, 0
      %v503 = vsel %vm297, %v217, 0
      %v505 = vsel %vm297, %v218, 0
      %v507 = vsel %vm297, %v220, 0
      %v509 = vsel %vm297, %v221, 0
      %v512 = vsel %vm330, %v229, 0
      %514 = vmatprep.subr.mxu0 0.0
      %515 = vmatpush1.msra.mxu0 %v512
      %516 = vmatprep.subr.mxu0 0.0
      %517 = vmatpush1.msra.mxu0 0.0
      %518 = vmatprep.subr.mxu0 0.0
      %519 = vmatpush1.msra.mxu0 0.0
      %520 = vmatprep.subr.mxu0 0.0
      %521 = vmatpush1.msra.mxu0 0.0
      %522 = vmatprep.subr.mxu0 0.0
      %523 = vmatpush1.msra.mxu0 0.0
      %524 = vmatprep.subr.mxu0 0.0
      %525 = vmatpush1.msra.mxu0 0.0
      %526 = vmatprep.subr.mxu0 0.0
      %527 = vmatpush1.msra.mxu0 0.0
      %528 = vmatprep.subr.mxu0 0.0
      %529 = vmatpush1.msra.mxu0 0.0
      %530 = vmatprep.subr.mxu0 0.0
      %531 = vmatpush1.msra.mxu0 0.0
      %532 = vmatprep.subr.mxu0 0.0
      %533 = vmatpush1.msra.mxu0 0.0
      %534 = vmatprep.subr.mxu0 0.0
      %535 = vmatpush1.msra.mxu0 0.0
      %536 = vmatprep.subr.mxu0 0.0
      %537 = vmatpush1.msra.mxu0 0.0
      %538 = vmatprep.subr.mxu0 0.0
      %539 = vmatpush1.msra.mxu0 0.0
      %540 = vmatprep.subr.mxu0 0.0
      %541 = vmatpush1.msra.mxu0 0.0
      %542 = vmatprep.subr.mxu0 0.0
      %543 = vmatpush1.msra.mxu0 0.0
      %544 = vmatprep.subr.mxu0 0.0
      %545 = vmatpush1.msra.mxu0 0.0
      %546 = vmatprep.subr.mxu0 0.0
      %547 = vmatpush1.msra.mxu0 0.0
      %548 = vmatprep.subr.mxu0 0.0
      %549 = vmatpush1.msra.mxu0 0.0
      %550 = vmatprep.subr.mxu0 0.0
      %551 = vmatpush1.msra.mxu0 0.0
      %552 = vmatprep.subr.mxu0 0.0
      %553 = vmatpush1.msra.mxu0 0.0
      %554 = vmatprep.subr.mxu0 0.0
      %555 = vmatpush1.msra.mxu0 0.0
      %556 = vmatprep.subr.mxu0 0.0
      %557 = vmatpush1.msra.mxu0 0.0
      %558 = vmatprep.subr.mxu0 0.0
      %559 = vmatpush1.msra.mxu0 0.0
      %560 = vmatprep.subr.mxu0 0.0
      %561 = vmatpush1.msra.mxu0 0.0
      %562 = vmatprep.subr.mxu0 0.0
      %563 = vmatpush1.msra.mxu0 0.0
      %564 = vmatprep.subr.mxu0 0.0
      %565 = vmatpush1.msra.mxu0 0.0
      %566 = vmatprep.subr.mxu0 0.0
      %567 = vmatpush1.msra.mxu0 0.0
      %568 = vmatprep.subr.mxu0 0.0
      %569 = vmatpush1.msra.mxu0 0.0
      %570 = vmatprep.subr.mxu0 0.0
      %571 = vmatpush1.msra.mxu0 0.0
      %572 = vmatprep.subr.mxu0 0.0
      %573 = vmatpush1.msra.mxu0 0.0
      %574 = vmatprep.subr.mxu0 0.0
      %575 = vmatpush1.msra.mxu0 0.0
      %576 = vmatprep.subr.mxu0 0.0
      %577 = vmatpush1.msra.mxu0 0.0
      %578 = vmatprep.mubr.f32.mxu0 0.0
      %579 = vmatmul.mubr.f32.gmra.mrb[0].mxu0 %v479
      %v580 = vpop.f32.mrb[0].mxu0
      %v581 = vadd.f32 %v401, %v580
      %v582 = vpop.f32.mrb[0].mxu0
      %583 = vmatprep.mubr.f32.mxu0 0.0
      %584 = vmatmul.mubr.f32.gmra.mrb[0].mxu0 %v481
      %v585 = vpop.f32.mrb[0].mxu0
      %v586 = vadd.f32 %v406, %v585
      %v587 = vpop.f32.mrb[0].mxu0
      %588 = vmatprep.mubr.f32.mxu0 0.0
      %589 = vmatmul.mubr.f32.gmra.mrb[0].mxu0 %v483
      %v590 = vpop.f32.mrb[0].mxu0
      %v591 = vadd.f32 %v411, %v590
      %v592 = vpop.f32.mrb[0].mxu0
      %593 = vmatprep.mubr.f32.mxu0 0.0
      %594 = vmatmul.mubr.f32.gmra.mrb[0].mxu0 %v485
      %v595 = vpop.f32.mrb[0].mxu0
      %v596 = vadd.f32 %v416, %v595
      %v597 = vpop.f32.mrb[0].mxu0
      %598 = vmatprep.mubr.f32.mxu0 0.0
      %599 = vmatmul.mubr.f32.gmra.mrb[0].mxu0 %v487
      %v600 = vpop.f32.mrb[0].mxu0
      %v601 = vadd.f32 %v421, %v600
      %v602 = vpop.f32.mrb[0].mxu0
      %603 = vmatprep.mubr.f32.mxu0 0.0
      %604 = vmatmul.mubr.f32.gmra.mrb[0].mxu0 %v489
      %v605 = vpop.f32.mrb[0].mxu0
      %v606 = vadd.f32 %v426, %v605
      %v607 = vpop.f32.mrb[0].mxu0
      %608 = vmatprep.mubr.f32.mxu0 0.0
      %609 = vmatmul.mubr.f32.gmra.mrb[0].mxu0 %v491
      %v610 = vpop.f32.mrb[0].mxu0
      %v611 = vadd.f32 %v431, %v610
      %v612 = vpop.f32.mrb[0].mxu0
      %613 = vmatprep.mubr.f32.mxu0 0.0
      %614 = vmatmul.mubr.f32.gmra.mrb[0].mxu0 %v493
      %v615 = vpop.f32.mrb[0].mxu0
      %v616 = vadd.f32 %v436, %v615
      %v617 = vpop.f32.mrb[0].mxu0
      %618 = vmatprep.mubr.f32.mxu0 0.0
      %619 = vmatmul.mubr.f32.gmra.mrb[0].mxu0 %v495
      %v620 = vpop.f32.mrb[0].mxu0
      %v621 = vadd.f32 %v441, %v620
      %v622 = vpop.f32.mrb[0].mxu0
      %623 = vmatprep.mubr.f32.mxu0 0.0
      %624 = vmatmul.mubr.f32.gmra.mrb[0].mxu0 %v497
      %v625 = vpop.f32.mrb[0].mxu0
      %v626 = vadd.f32 %v446, %v625
      %v627 = vpop.f32.mrb[0].mxu0
      %628 = vmatprep.mubr.f32.mxu0 0.0
      %629 = vmatmul.mubr.f32.gmra.mrb[0].mxu0 %v499
      %v630 = vpop.f32.mrb[0].mxu0
      %v631 = vadd.f32 %v451, %v630
      %v632 = vpop.f32.mrb[0].mxu0
      %633 = vmatprep.mubr.f32.mxu0 0.0
      %634 = vmatmul.mubr.f32.gmra.mrb[0].mxu0 %v501
      %v635 = vpop.f32.mrb[0].mxu0
      %v636 = vadd.f32 %v456, %v635
      %v637 = vpop.f32.mrb[0].mxu0
      %638 = vmatprep.mubr.f32.mxu0 0.0
      %639 = vmatmul.mubr.f32.gmra.mrb[0].mxu0 %v503
      %v640 = vpop.f32.mrb[0].mxu0
      %v641 = vadd.f32 %v461, %v640
      %v642 = vpop.f32.mrb[0].mxu0
      %643 = vmatprep.mubr.f32.mxu0 0.0
      %644 = vmatmul.mubr.f32.gmra.mrb[0].mxu0 %v505
      %v645 = vpop.f32.mrb[0].mxu0
      %v646 = vadd.f32 %v466, %v645
      %v647 = vpop.f32.mrb[0].mxu0
      %648 = vmatprep.mubr.f32.mxu0 0.0
      %649 = vmatmul.mubr.f32.gmra.mrb[0].mxu0 %v507
      %v650 = vpop.f32.mrb[0].mxu0
      %v651 = vadd.f32 %v471, %v650
      %v652 = vpop.f32.mrb[0].mxu0
      %653 = vmatprep.mubr.f32.mxu0 0.0
      %654 = vmatmul.mubr.f32.gmra.mrb[0].mxu0 %v509
      %v655 = vpop.f32.mrb[0].mxu0
      %v656 = vadd.f32 %v476, %v655
      %v657 = vpop.f32.mrb[0].mxu0
      %658 = vdwg.mxu0
      %vm659 = vcmask 1045504
      %v660 = vrot.slane %v199, 2
      %v661 = vrot.slane %v200, 2
      %v662 = vsel %vm659, %v660, %v661
      %v663 = vrot.slane %v201, 2
      %v664 = vsel %vm659, %v661, %v663
      %v665 = vrot.slane %v202, 2
      %v666 = vrot.slane %v203, 2
      %v667 = vsel %vm659, %v665, %v666
      %v668 = vrot.slane %v204, 2
      %v669 = vsel %vm659, %v666, %v668
      %v670 = vrot.slane %v205, 2
      %v671 = vrot.slane %v206, 2
      %v672 = vsel %vm659, %v670, %v671
      %v673 = vrot.slane %v207, 2
      %v674 = vsel %vm659, %v671, %v673
      %v675 = vrot.slane %v208, 2
      %v676 = vrot.slane %v209, 2
      %v677 = vsel %vm659, %v675, %v676
      %v678 = vrot.slane %v210, 2
      %v679 = vsel %vm659, %v676, %v678
      %v680 = vrot.slane %v211, 2
      %v681 = vrot.slane %v212, 2
      %v682 = vsel %vm659, %v680, %v681
      %v683 = vrot.slane %v213, 2
      %v684 = vsel %vm659, %v681, %v683
      %v685 = vrot.slane %v214, 2
      %v686 = vrot.slane %v215, 2
      %v687 = vsel %vm659, %v685, %v686
      %v688 = vrot.slane %v216, 2
      %v689 = vsel %vm659, %v686, %v688
      %v690 = vrot.slane %v217, 2
      %v691 = vrot.slane %v218, 2
      %v692 = vsel %vm659, %v690, %v691
      %v693 = vrot.slane %v219, 2
      %v694 = vsel %vm659, %v691, %v693
      %v695 = vrot.slane %v220, 2
      %v696 = vrot.slane %v221, 2
      %v697 = vsel %vm659, %v695, %v696
      %v698 = vrot.slane %v222, 2
      %v699 = vsel %vm659, %v696, %v698
      %s700 = scalar_lea.vmem %s1, 8
      %v701 = vld [vmem:[%s700] sm:$0xf]
      %v702 = vsel %vm297, %v662, 0
      %v704 = vsel %vm297, %v664, 0
      %v706 = vsel %vm297, %v667, 0
      %v708 = vsel %vm297, %v669, 0
      %v710 = vsel %vm297, %v672, 0
      %v712 = vsel %vm297, %v674, 0
      %v714 = vsel %vm297, %v677, 0
      %v716 = vsel %vm297, %v679, 0
      %v718 = vsel %vm297, %v682, 0
      %v720 = vsel %vm297, %v684, 0
      %v722 = vsel %vm297, %v687, 0
      %v724 = vsel %vm297, %v689, 0
      %v726 = vsel %vm297, %v692, 0
      %v728 = vsel %vm297, %v694, 0
      %v730 = vsel %vm297, %v697, 0
      %v732 = vsel %vm297, %v699, 0
      %v735 = vsel %vm330, %v701, 0
      %737 = vmatprep.subr.mxu0 0.0
      %738 = vmatpush1.msra.mxu0 %v735
      %739 = vmatprep.subr.mxu0 0.0
      %740 = vmatpush1.msra.mxu0 0.0
      %741 = vmatprep.subr.mxu0 0.0
      %742 = vmatpush1.msra.mxu0 0.0
      %743 = vmatprep.subr.mxu0 0.0
      %744 = vmatpush1.msra.mxu0 0.0
      %745 = vmatprep.subr.mxu0 0.0
      %746 = vmatpush1.msra.mxu0 0.0
      %747 = vmatprep.subr.mxu0 0.0
      %748 = vmatpush1.msra.mxu0 0.0
      %749 = vmatprep.subr.mxu0 0.0
      %750 = vmatpush1.msra.mxu0 0.0
      %751 = vmatprep.subr.mxu0 0.0
      %752 = vmatpush1.msra.mxu0 0.0
      %753 = vmatprep.subr.mxu0 0.0
      %754 = vmatpush1.msra.mxu0 0.0
      %755 = vmatprep.subr.mxu0 0.0
      %756 = vmatpush1.msra.mxu0 0.0
      %757 = vmatprep.subr.mxu0 0.0
      %758 = vmatpush1.msra.mxu0 0.0
      %759 = vmatprep.subr.mxu0 0.0
      %760 = vmatpush1.msra.mxu0 0.0
      %761 = vmatprep.subr.mxu0 0.0
      %762 = vmatpush1.msra.mxu0 0.0
      %763 = vmatprep.subr.mxu0 0.0
      %764 = vmatpush1.msra.mxu0 0.0
      %765 = vmatprep.subr.mxu0 0.0
      %766 = vmatpush1.msra.mxu0 0.0
      %767 = vmatprep.subr.mxu0 0.0
      %768 = vmatpush1.msra.mxu0 0.0
      %769 = vmatprep.subr.mxu0 0.0
      %770 = vmatpush1.msra.mxu0 0.0
      %771 = vmatprep.subr.mxu0 0.0
      %772 = vmatpush1.msra.mxu0 0.0
      %773 = vmatprep.subr.mxu0 0.0
      %774 = vmatpush1.msra.mxu0 0.0
      %775 = vmatprep.subr.mxu0 0.0
      %776 = vmatpush1.msra.mxu0 0.0
      %777 = vmatprep.subr.mxu0 0.0
      %778 = vmatpush1.msra.mxu0 0.0
      %779 = vmatprep.subr.mxu0 0.0
      %780 = vmatpush1.msra.mxu0 0.0
      %781 = vmatprep.subr.mxu0 0.0
      %782 = vmatpush1.msra.mxu0 0.0
      %783 = vmatprep.subr.mxu0 0.0
      %784 = vmatpush1.msra.mxu0 0.0
      %785 = vmatprep.subr.mxu0 0.0
      %786 = vmatpush1.msra.mxu0 0.0
      %787 = vmatprep.subr.mxu0 0.0
      %788 = vmatpush1.msra.mxu0 0.0
      %789 = vmatprep.subr.mxu0 0.0
      %790 = vmatpush1.msra.mxu0 0.0
      %791 = vmatprep.subr.mxu0 0.0
      %792 = vmatpush1.msra.mxu0 0.0
      %793 = vmatprep.subr.mxu0 0.0
      %794 = vmatpush1.msra.mxu0 0.0
      %795 = vmatprep.subr.mxu0 0.0
      %796 = vmatpush1.msra.mxu0 0.0
      %797 = vmatprep.subr.mxu0 0.0
      %798 = vmatpush1.msra.mxu0 0.0
      %799 = vmatprep.subr.mxu0 0.0
      %800 = vmatpush1.msra.mxu0 0.0
      %801 = vmatprep.mubr.f32.mxu0 0.0
      %802 = vmatmul.mubr.f32.gmra.mrb[0].mxu0 %v702
      %v803 = vpop.f32.mrb[0].mxu0
      %v804 = vadd.f32 0.0, %v803
      %v805 = vpop.f32.mrb[0].mxu0
      %806 = vmatprep.mubr.f32.mxu0 0.0
      %807 = vmatmul.mubr.f32.gmra.mrb[0].mxu0 %v704
      %v808 = vpop.f32.mrb[0].mxu0
      %v809 = vadd.f32 0.0, %v808
      %v810 = vpop.f32.mrb[0].mxu0
      %811 = vmatprep.mubr.f32.mxu0 0.0
      %812 = vmatmul.mubr.f32.gmra.mrb[0].mxu0 %v706
      %v813 = vpop.f32.mrb[0].mxu0
      %v814 = vadd.f32 0.0, %v813
      %v815 = vpop.f32.mrb[0].mxu0
      %816 = vmatprep.mubr.f32.mxu0 0.0
      %817 = vmatmul.mubr.f32.gmra.mrb[0].mxu0 %v708
      %v818 = vpop.f32.mrb[0].mxu0
      %v819 = vadd.f32 0.0, %v818
      %v820 = vpop.f32.mrb[0].mxu0
      %821 = vmatprep.mubr.f32.mxu0 0.0
      %822 = vmatmul.mubr.f32.gmra.mrb[0].mxu0 %v710
      %v823 = vpop.f32.mrb[0].mxu0
      %v824 = vadd.f32 0.0, %v823
      %v825 = vpop.f32.mrb[0].mxu0
      %826 = vmatprep.mubr.f32.mxu0 0.0
      %827 = vmatmul.mubr.f32.gmra.mrb[0].mxu0 %v712
      %v828 = vpop.f32.mrb[0].mxu0
      %v829 = vadd.f32 0.0, %v828
      %v830 = vpop.f32.mrb[0].mxu0
      %831 = vmatprep.mubr.f32.mxu0 0.0
      %832 = vmatmul.mubr.f32.gmra.mrb[0].mxu0 %v714
      %v833 = vpop.f32.mrb[0].mxu0
      %v834 = vadd.f32 0.0, %v833
      %v835 = vpop.f32.mrb[0].mxu0
      %836 = vmatprep.mubr.f32.mxu0 0.0
      %837 = vmatmul.mubr.f32.gmra.mrb[0].mxu0 %v716
      %v838 = vpop.f32.mrb[0].mxu0
      %v839 = vadd.f32 0.0, %v838
      %v840 = vpop.f32.mrb[0].mxu0
      %841 = vmatprep.mubr.f32.mxu0 0.0
      %842 = vmatmul.mubr.f32.gmra.mrb[0].mxu0 %v718
      %v843 = vpop.f32.mrb[0].mxu0
      %v844 = vadd.f32 0.0, %v843
      %v845 = vpop.f32.mrb[0].mxu0
      %846 = vmatprep.mubr.f32.mxu0 0.0
      %847 = vmatmul.mubr.f32.gmra.mrb[0].mxu0 %v720
      %v848 = vpop.f32.mrb[0].mxu0
      %v849 = vadd.f32 0.0, %v848
      %v850 = vpop.f32.mrb[0].mxu0
      %851 = vmatprep.mubr.f32.mxu0 0.0
      %852 = vmatmul.mubr.f32.gmra.mrb[0].mxu0 %v722
      %v853 = vpop.f32.mrb[0].mxu0
      %v854 = vadd.f32 0.0, %v853
      %v855 = vpop.f32.mrb[0].mxu0
      %856 = vmatprep.mubr.f32.mxu0 0.0
      %857 = vmatmul.mubr.f32.gmra.mrb[0].mxu0 %v724
      %v858 = vpop.f32.mrb[0].mxu0
      %v859 = vadd.f32 0.0, %v858
      %v860 = vpop.f32.mrb[0].mxu0
      %861 = vmatprep.mubr.f32.mxu0 0.0
      %862 = vmatmul.mubr.f32.gmra.mrb[0].mxu0 %v726
      %v863 = vpop.f32.mrb[0].mxu0
      %v864 = vadd.f32 0.0, %v863
      %v865 = vpop.f32.mrb[0].mxu0
      %866 = vmatprep.mubr.f32.mxu0 0.0
      %867 = vmatmul.mubr.f32.gmra.mrb[0].mxu0 %v728
      %v868 = vpop.f32.mrb[0].mxu0
      %v869 = vadd.f32 0.0, %v868
      %v870 = vpop.f32.mrb[0].mxu0
      %871 = vmatprep.mubr.f32.mxu0 0.0
      %872 = vmatmul.mubr.f32.gmra.mrb[0].mxu0 %v730
      %v873 = vpop.f32.mrb[0].mxu0
      %v874 = vadd.f32 0.0, %v873
      %v875 = vpop.f32.mrb[0].mxu0
      %876 = vmatprep.mubr.f32.mxu0 0.0
      %877 = vmatmul.mubr.f32.gmra.mrb[0].mxu0 %v732
      %v878 = vpop.f32.mrb[0].mxu0
      %v879 = vadd.f32 0.0, %v878
      %v880 = vpop.f32.mrb[0].mxu0
      %881 = vdwg.mxu0
      %v882 = vadd.f32 %v581, %v804
      %v883 = vadd.f32 %v586, %v809
      %v884 = vadd.f32 %v591, %v814
      %v885 = vadd.f32 %v596, %v819
      %v886 = vadd.f32 %v601, %v824
      %v887 = vadd.f32 %v606, %v829
      %v888 = vadd.f32 %v611, %v834
      %v889 = vadd.f32 %v616, %v839
      %v890 = vadd.f32 %v621, %v844
      %v891 = vadd.f32 %v626, %v849
      %v892 = vadd.f32 %v631, %v854
      %v893 = vadd.f32 %v636, %v859
      %v894 = vadd.f32 %v641, %v864
      %v895 = vadd.f32 %v646, %v869
      %v896 = vadd.f32 %v651, %v874
      %v897 = vadd.f32 %v656, %v879
      %s898 = scalar_lea.vmem %s1, 12
      %v899 = vld [vmem:[%s898] sm:$0xf]
      %v901 = vsel %vm297, %v223, 0
      %v904 = vsel %vm297, %v224, 0
      %v907 = vsel %vm330, %v899, 0
      %909 = vmatprep.subr.mxu0 0.0
      %910 = vmatpush1.msra.mxu0 %v907
      %911 = vmatprep.subr.mxu0 0.0
      %912 = vmatpush1.msra.mxu0 0.0
      %913 = vmatprep.subr.mxu0 0.0
      %914 = vmatpush1.msra.mxu0 0.0
      %915 = vmatprep.subr.mxu0 0.0
      %916 = vmatpush1.msra.mxu0 0.0
      %917 = vmatprep.subr.mxu0 0.0
      %918 = vmatpush1.msra.mxu0 0.0
      %919 = vmatprep.subr.mxu0 0.0
      %920 = vmatpush1.msra.mxu0 0.0
      %921 = vmatprep.subr.mxu0 0.0
      %922 = vmatpush1.msra.mxu0 0.0
      %923 = vmatprep.subr.mxu0 0.0
      %924 = vmatpush1.msra.mxu0 0.0
      %925 = vmatprep.subr.mxu0 0.0
      %926 = vmatpush1.msra.mxu0 0.0
      %927 = vmatprep.subr.mxu0 0.0
      %928 = vmatpush1.msra.mxu0 0.0
      %929 = vmatprep.subr.mxu0 0.0
      %930 = vmatpush1.msra.mxu0 0.0
      %931 = vmatprep.subr.mxu0 0.0
      %932 = vmatpush1.msra.mxu0 0.0
      %933 = vmatprep.subr.mxu0 0.0
      %934 = vmatpush1.msra.mxu0 0.0
      %935 = vmatprep.subr.mxu0 0.0
      %936 = vmatpush1.msra.mxu0 0.0
      %937 = vmatprep.subr.mxu0 0.0
      %938 = vmatpush1.msra.mxu0 0.0
      %939 = vmatprep.subr.mxu0 0.0
      %940 = vmatpush1.msra.mxu0 0.0
      %941 = vmatprep.subr.mxu0 0.0
      %942 = vmatpush1.msra.mxu0 0.0
      %943 = vmatprep.subr.mxu0 0.0
      %944 = vmatpush1.msra.mxu0 0.0
      %945 = vmatprep.subr.mxu0 0.0
      %946 = vmatpush1.msra.mxu0 0.0
      %947 = vmatprep.subr.mxu0 0.0
      %948 = vmatpush1.msra.mxu0 0.0
      %949 = vmatprep.subr.mxu0 0.0
      %950 = vmatpush1.msra.mxu0 0.0
      %951 = vmatprep.subr.mxu0 0.0
      %952 = vmatpush1.msra.mxu0 0.0
      %953 = vmatprep.subr.mxu0 0.0
      %954 = vmatpush1.msra.mxu0 0.0
      %955 = vmatprep.subr.mxu0 0.0
      %956 = vmatpush1.msra.mxu0 0.0
      %957 = vmatprep.subr.mxu0 0.0
      %958 = vmatpush1.msra.mxu0 0.0
      %959 = vmatprep.subr.mxu0 0.0
      %960 = vmatpush1.msra.mxu0 0.0
      %961 = vmatprep.subr.mxu0 0.0
      %962 = vmatpush1.msra.mxu0 0.0
      %963 = vmatprep.subr.mxu0 0.0
      %964 = vmatpush1.msra.mxu0 0.0
      %965 = vmatprep.subr.mxu0 0.0
      %966 = vmatpush1.msra.mxu0 0.0
      %967 = vmatprep.subr.mxu0 0.0
      %968 = vmatpush1.msra.mxu0 0.0
      %969 = vmatprep.subr.mxu0 0.0
      %970 = vmatpush1.msra.mxu0 0.0
      %971 = vmatprep.subr.mxu0 0.0
      %972 = vmatpush1.msra.mxu0 0.0
      %973 = vmatprep.mubr.f32.mxu0 0.0
      %974 = vmatmul.mubr.f32.gmra.mrb[0].mxu0 %v483
      %v975 = vpop.f32.mrb[0].mxu0
      %v976 = vadd.f32 0.0, %v975
      %v977 = vpop.f32.mrb[0].mxu0
      %978 = vmatprep.mubr.f32.mxu0 0.0
      %979 = vmatmul.mubr.f32.gmra.mrb[0].mxu0 %v485
      %v980 = vpop.f32.mrb[0].mxu0
      %v981 = vadd.f32 0.0, %v980
      %v982 = vpop.f32.mrb[0].mxu0
      %983 = vmatprep.mubr.f32.mxu0 0.0
      %984 = vmatmul.mubr.f32.gmra.mrb[0].mxu0 %v487
      %v985 = vpop.f32.mrb[0].mxu0
      %v986 = vadd.f32 0.0, %v985
      %v987 = vpop.f32.mrb[0].mxu0
      %988 = vmatprep.mubr.f32.mxu0 0.0
      %989 = vmatmul.mubr.f32.gmra.mrb[0].mxu0 %v489
      %v990 = vpop.f32.mrb[0].mxu0
      %v991 = vadd.f32 0.0, %v990
      %v992 = vpop.f32.mrb[0].mxu0
      %993 = vmatprep.mubr.f32.mxu0 0.0
      %994 = vmatmul.mubr.f32.gmra.mrb[0].mxu0 %v491
      %v995 = vpop.f32.mrb[0].mxu0
      %v996 = vadd.f32 0.0, %v995
      %v997 = vpop.f32.mrb[0].mxu0
      %998 = vmatprep.mubr.f32.mxu0 0.0
      %999 = vmatmul.mubr.f32.gmra.mrb[0].mxu0 %v493
      %v1000 = vpop.f32.mrb[0].mxu0
      %v1001 = vadd.f32 0.0, %v1000
      %v1002 = vpop.f32.mrb[0].mxu0
      %1003 = vmatprep.mubr.f32.mxu0 0.0
      %1004 = vmatmul.mubr.f32.gmra.mrb[0].mxu0 %v495
      %v1005 = vpop.f32.mrb[0].mxu0
      %v1006 = vadd.f32 0.0, %v1005
      %v1007 = vpop.f32.mrb[0].mxu0
      %1008 = vmatprep.mubr.f32.mxu0 0.0
      %1009 = vmatmul.mubr.f32.gmra.mrb[0].mxu0 %v497
      %v1010 = vpop.f32.mrb[0].mxu0
      %v1011 = vadd.f32 0.0, %v1010
      %v1012 = vpop.f32.mrb[0].mxu0
      %1013 = vmatprep.mubr.f32.mxu0 0.0
      %1014 = vmatmul.mubr.f32.gmra.mrb[0].mxu0 %v499
      %v1015 = vpop.f32.mrb[0].mxu0
      %v1016 = vadd.f32 0.0, %v1015
      %v1017 = vpop.f32.mrb[0].mxu0
      %1018 = vmatprep.mubr.f32.mxu0 0.0
      %1019 = vmatmul.mubr.f32.gmra.mrb[0].mxu0 %v501
      %v1020 = vpop.f32.mrb[0].mxu0
      %v1021 = vadd.f32 0.0, %v1020
      %v1022 = vpop.f32.mrb[0].mxu0
      %1023 = vmatprep.mubr.f32.mxu0 0.0
      %1024 = vmatmul.mubr.f32.gmra.mrb[0].mxu0 %v503
      %v1025 = vpop.f32.mrb[0].mxu0
      %v1026 = vadd.f32 0.0, %v1025
      %v1027 = vpop.f32.mrb[0].mxu0
      %1028 = vmatprep.mubr.f32.mxu0 0.0
      %1029 = vmatmul.mubr.f32.gmra.mrb[0].mxu0 %v505
      %v1030 = vpop.f32.mrb[0].mxu0
      %v1031 = vadd.f32 0.0, %v1030
      %v1032 = vpop.f32.mrb[0].mxu0
      %1033 = vmatprep.mubr.f32.mxu0 0.0
      %1034 = vmatmul.mubr.f32.gmra.mrb[0].mxu0 %v507
      %v1035 = vpop.f32.mrb[0].mxu0
      %v1036 = vadd.f32 0.0, %v1035
      %v1037 = vpop.f32.mrb[0].mxu0
      %1038 = vmatprep.mubr.f32.mxu0 0.0
      %1039 = vmatmul.mubr.f32.gmra.mrb[0].mxu0 %v509
      %v1040 = vpop.f32.mrb[0].mxu0
      %v1041 = vadd.f32 0.0, %v1040
      %v1042 = vpop.f32.mrb[0].mxu0
      %1043 = vmatprep.mubr.f32.mxu0 0.0
      %1044 = vmatmul.mubr.f32.gmra.mrb[0].mxu0 %v901
      %v1045 = vpop.f32.mrb[0].mxu0
      %v1046 = vadd.f32 0.0, %v1045
      %v1047 = vpop.f32.mrb[0].mxu0
      %1048 = vmatprep.mubr.f32.mxu0 0.0
      %1049 = vmatmul.mubr.f32.gmra.mrb[0].mxu0 %v904
      %v1050 = vpop.f32.mrb[0].mxu0
      %v1051 = vadd.f32 0.0, %v1050
      %v1052 = vpop.f32.mrb[0].mxu0
      %1053 = vdwg.mxu0
      %v1054 = vadd.f32 %v882, %v976
      %v1055 = vadd.f32 %v883, %v981
      %v1056 = vadd.f32 %v884, %v986
      %v1057 = vadd.f32 %v885, %v991
      %v1058 = vadd.f32 %v886, %v996
      %v1059 = vadd.f32 %v887, %v1001
      %v1060 = vadd.f32 %v888, %v1006
      %v1061 = vadd.f32 %v889, %v1011
      %v1062 = vadd.f32 %v890, %v1016
      %v1063 = vadd.f32 %v891, %v1021
      %v1064 = vadd.f32 %v892, %v1026
      %v1065 = vadd.f32 %v893, %v1031
      %v1066 = vadd.f32 %v894, %v1036
      %v1067 = vadd.f32 %v895, %v1041
      %v1068 = vadd.f32 %v896, %v1046
      %v1069 = vadd.f32 %v897, %v1051
      %v1071 = vrot.slane %v223, 1
      %v1072 = vrot.slane %v224, 1
      %v1073 = vsel %vm254, %v1071, %v1072
      %v1074 = vrot.slane %v225, 1
      %v1075 = vsel %vm254, %v1072, %v1074
      %s1076 = scalar_lea.vmem %s1, 16
      %v1077 = vld [vmem:[%s1076] sm:$0xf]
      %v1078 = vsel %vm297, %v1073, 0
      %v1080 = vsel %vm297, %v1075, 0
      %v1083 = vsel %vm330, %v1077, 0
      %1085 = vmatprep.subr.mxu0 0.0
      %1086 = vmatpush1.msra.mxu0 %v1083
      %1087 = vmatprep.subr.mxu0 0.0
      %1088 = vmatpush1.msra.mxu0 0.0
      %1089 = vmatprep.subr.mxu0 0.0
      %1090 = vmatpush1.msra.mxu0 0.0
      %1091 = vmatprep.subr.mxu0 0.0
      %1092 = vmatpush1.msra.mxu0 0.0
      %1093 = vmatprep.subr.mxu0 0.0
      %1094 = vmatpush1.msra.mxu0 0.0
      %1095 = vmatprep.subr.mxu0 0.0
      %1096 = vmatpush1.msra.mxu0 0.0
      %1097 = vmatprep.subr.mxu0 0.0
      %1098 = vmatpush1.msra.mxu0 0.0
      %1099 = vmatprep.subr.mxu0 0.0
      %1100 = vmatpush1.msra.mxu0 0.0
      %1101 = vmatprep.subr.mxu0 0.0
      %1102 = vmatpush1.msra.mxu0 0.0
      %1103 = vmatprep.subr.mxu0 0.0
      %1104 = vmatpush1.msra.mxu0 0.0
      %1105 = vmatprep.subr.mxu0 0.0
      %1106 = vmatpush1.msra.mxu0 0.0
      %1107 = vmatprep.subr.mxu0 0.0
      %1108 = vmatpush1.msra.mxu0 0.0
      %1109 = vmatprep.subr.mxu0 0.0
      %1110 = vmatpush1.msra.mxu0 0.0
      %1111 = vmatprep.subr.mxu0 0.0
      %1112 = vmatpush1.msra.mxu0 0.0
      %1113 = vmatprep.subr.mxu0 0.0
      %1114 = vmatpush1.msra.mxu0 0.0
      %1115 = vmatprep.subr.mxu0 0.0
      %1116 = vmatpush1.msra.mxu0 0.0
      %1117 = vmatprep.subr.mxu0 0.0
      %1118 = vmatpush1.msra.mxu0 0.0
      %1119 = vmatprep.subr.mxu0 0.0
      %1120 = vmatpush1.msra.mxu0 0.0
      %1121 = vmatprep.subr.mxu0 0.0
      %1122 = vmatpush1.msra.mxu0 0.0
      %1123 = vmatprep.subr.mxu0 0.0
      %1124 = vmatpush1.msra.mxu0 0.0
      %1125 = vmatprep.subr.mxu0 0.0
      %1126 = vmatpush1.msra.mxu0 0.0
      %1127 = vmatprep.subr.mxu0 0.0
      %1128 = vmatpush1.msra.mxu0 0.0
      %1129 = vmatprep.subr.mxu0 0.0
      %1130 = vmatpush1.msra.mxu0 0.0
      %1131 = vmatprep.subr.mxu0 0.0
      %1132 = vmatpush1.msra.mxu0 0.0
      %1133 = vmatprep.subr.mxu0 0.0
      %1134 = vmatpush1.msra.mxu0 0.0
      %1135 = vmatprep.subr.mxu0 0.0
      %1136 = vmatpush1.msra.mxu0 0.0
      %1137 = vmatprep.subr.mxu0 0.0
      %1138 = vmatpush1.msra.mxu0 0.0
      %1139 = vmatprep.subr.mxu0 0.0
      %1140 = vmatpush1.msra.mxu0 0.0
      %1141 = vmatprep.subr.mxu0 0.0
      %1142 = vmatpush1.msra.mxu0 0.0
      %1143 = vmatprep.subr.mxu0 0.0
      %1144 = vmatpush1.msra.mxu0 0.0
      %1145 = vmatprep.subr.mxu0 0.0
      %1146 = vmatpush1.msra.mxu0 0.0
      %1147 = vmatprep.subr.mxu0 0.0
      %1148 = vmatpush1.msra.mxu0 0.0
      %1149 = vmatprep.mubr.f32.mxu0 0.0
      %1150 = vmatmul.mubr.f32.gmra.mrb[0].mxu0 %v302
      %v1151 = vpop.f32.mrb[0].mxu0
      %v1152 = vadd.f32 0.0, %v1151
      %v1153 = vpop.f32.mrb[0].mxu0
      %1154 = vmatprep.mubr.f32.mxu0 0.0
      %1155 = vmatmul.mubr.f32.gmra.mrb[0].mxu0 %v304
      %v1156 = vpop.f32.mrb[0].mxu0
      %v1157 = vadd.f32 0.0, %v1156
      %v1158 = vpop.f32.mrb[0].mxu0
      %1159 = vmatprep.mubr.f32.mxu0 0.0
      %1160 = vmatmul.mubr.f32.gmra.mrb[0].mxu0 %v306
      %v1161 = vpop.f32.mrb[0].mxu0
      %v1162 = vadd.f32 0.0, %v1161
      %v1163 = vpop.f32.mrb[0].mxu0
      %1164 = vmatprep.mubr.f32.mxu0 0.0
      %1165 = vmatmul.mubr.f32.gmra.mrb[0].mxu0 %v308
      %v1166 = vpop.f32.mrb[0].mxu0
      %v1167 = vadd.f32 0.0, %v1166
      %v1168 = vpop.f32.mrb[0].mxu0
      %1169 = vmatprep.mubr.f32.mxu0 0.0
      %1170 = vmatmul.mubr.f32.gmra.mrb[0].mxu0 %v310
      %v1171 = vpop.f32.mrb[0].mxu0
      %v1172 = vadd.f32 0.0, %v1171
      %v1173 = vpop.f32.mrb[0].mxu0
      %1174 = vmatprep.mubr.f32.mxu0 0.0
      %1175 = vmatmul.mubr.f32.gmra.mrb[0].mxu0 %v312
      %v1176 = vpop.f32.mrb[0].mxu0
      %v1177 = vadd.f32 0.0, %v1176
      %v1178 = vpop.f32.mrb[0].mxu0
      %1179 = vmatprep.mubr.f32.mxu0 0.0
      %1180 = vmatmul.mubr.f32.gmra.mrb[0].mxu0 %v314
      %v1181 = vpop.f32.mrb[0].mxu0
      %v1182 = vadd.f32 0.0, %v1181
      %v1183 = vpop.f32.mrb[0].mxu0
      %1184 = vmatprep.mubr.f32.mxu0 0.0
      %1185 = vmatmul.mubr.f32.gmra.mrb[0].mxu0 %v316
      %v1186 = vpop.f32.mrb[0].mxu0
      %v1187 = vadd.f32 0.0, %v1186
      %v1188 = vpop.f32.mrb[0].mxu0
      %1189 = vmatprep.mubr.f32.mxu0 0.0
      %1190 = vmatmul.mubr.f32.gmra.mrb[0].mxu0 %v318
      %v1191 = vpop.f32.mrb[0].mxu0
      %v1192 = vadd.f32 0.0, %v1191
      %v1193 = vpop.f32.mrb[0].mxu0
      %1194 = vmatprep.mubr.f32.mxu0 0.0
      %1195 = vmatmul.mubr.f32.gmra.mrb[0].mxu0 %v320
      %v1196 = vpop.f32.mrb[0].mxu0
      %v1197 = vadd.f32 0.0, %v1196
      %v1198 = vpop.f32.mrb[0].mxu0
      %1199 = vmatprep.mubr.f32.mxu0 0.0
      %1200 = vmatmul.mubr.f32.gmra.mrb[0].mxu0 %v322
      %v1201 = vpop.f32.mrb[0].mxu0
      %v1202 = vadd.f32 0.0, %v1201
      %v1203 = vpop.f32.mrb[0].mxu0
      %1204 = vmatprep.mubr.f32.mxu0 0.0
      %1205 = vmatmul.mubr.f32.gmra.mrb[0].mxu0 %v324
      %v1206 = vpop.f32.mrb[0].mxu0
      %v1207 = vadd.f32 0.0, %v1206
      %v1208 = vpop.f32.mrb[0].mxu0
      %1209 = vmatprep.mubr.f32.mxu0 0.0
      %1210 = vmatmul.mubr.f32.gmra.mrb[0].mxu0 %v326
      %v1211 = vpop.f32.mrb[0].mxu0
      %v1212 = vadd.f32 0.0, %v1211
      %v1213 = vpop.f32.mrb[0].mxu0
      %1214 = vmatprep.mubr.f32.mxu0 0.0
      %1215 = vmatmul.mubr.f32.gmra.mrb[0].mxu0 %v328
      %v1216 = vpop.f32.mrb[0].mxu0
      %v1217 = vadd.f32 0.0, %v1216
      %v1218 = vpop.f32.mrb[0].mxu0
      %1219 = vmatprep.mubr.f32.mxu0 0.0
      %1220 = vmatmul.mubr.f32.gmra.mrb[0].mxu0 %v1078
      %v1221 = vpop.f32.mrb[0].mxu0
      %v1222 = vadd.f32 0.0, %v1221
      %v1223 = vpop.f32.mrb[0].mxu0
      %1224 = vmatprep.mubr.f32.mxu0 0.0
      %1225 = vmatmul.mubr.f32.gmra.mrb[0].mxu0 %v1080
      %v1226 = vpop.f32.mrb[0].mxu0
      %v1227 = vadd.f32 0.0, %v1226
      %v1228 = vpop.f32.mrb[0].mxu0
      %1229 = vdwg.mxu0
      %v1230 = vadd.f32 %v1054, %v1152
      %v1231 = vadd.f32 %v1055, %v1157
      %v1232 = vadd.f32 %v1056, %v1162
      %v1233 = vadd.f32 %v1057, %v1167
      %v1234 = vadd.f32 %v1058, %v1172
      %v1235 = vadd.f32 %v1059, %v1177
      %v1236 = vadd.f32 %v1060, %v1182
      %v1237 = vadd.f32 %v1061, %v1187
      %v1238 = vadd.f32 %v1062, %v1192
      %v1239 = vadd.f32 %v1063, %v1197
      %v1240 = vadd.f32 %v1064, %v1202
      %v1241 = vadd.f32 %v1065, %v1207
      %v1242 = vadd.f32 %v1066, %v1212
      %v1243 = vadd.f32 %v1067, %v1217
      %v1244 = vadd.f32 %v1068, %v1222
      %v1245 = vadd.f32 %v1069, %v1227
      %v1246 = vrot.slane %v223, 2
      %v1247 = vrot.slane %v224, 2
      %v1248 = vsel %vm659, %v1246, %v1247
      %v1249 = vrot.slane %v225, 2
      %v1250 = vsel %vm659, %v1247, %v1249
      %s1251 = scalar_lea.vmem %s1, 20
      %v1252 = vld [vmem:[%s1251] sm:$0xf]
      %v1253 = vsel %vm297, %v1248, 0
      %v1255 = vsel %vm297, %v1250, 0
      %v1258 = vsel %vm330, %v1252, 0
      %1260 = vmatprep.subr.mxu0 0.0
      %1261 = vmatpush1.msra.mxu0 %v1258
      %1262 = vmatprep.subr.mxu0 0.0
      %1263 = vmatpush1.msra.mxu0 0.0
      %1264 = vmatprep.subr.mxu0 0.0
      %1265 = vmatpush1.msra.mxu0 0.0
      %1266 = vmatprep.subr.mxu0 0.0
      %1267 = vmatpush1.msra.mxu0 0.0
      %1268 = vmatprep.subr.mxu0 0.0
      %1269 = vmatpush1.msra.mxu0 0.0
      %1270 = vmatprep.subr.mxu0 0.0
      %1271 = vmatpush1.msra.mxu0 0.0
      %1272 = vmatprep.subr.mxu0 0.0
      %1273 = vmatpush1.msra.mxu0 0.0
      %1274 = vmatprep.subr.mxu0 0.0
      %1275 = vmatpush1.msra.mxu0 0.0
      %1276 = vmatprep.subr.mxu0 0.0
      %1277 = vmatpush1.msra.mxu0 0.0
      %1278 = vmatprep.subr.mxu0 0.0
      %1279 = vmatpush1.msra.mxu0 0.0
      %1280 = vmatprep.subr.mxu0 0.0
      %1281 = vmatpush1.msra.mxu0 0.0
      %1282 = vmatprep.subr.mxu0 0.0
      %1283 = vmatpush1.msra.mxu0 0.0
      %1284 = vmatprep.subr.mxu0 0.0
      %1285 = vmatpush1.msra.mxu0 0.0
      %1286 = vmatprep.subr.mxu0 0.0
      %1287 = vmatpush1.msra.mxu0 0.0
      %1288 = vmatprep.subr.mxu0 0.0
      %1289 = vmatpush1.msra.mxu0 0.0
      %1290 = vmatprep.subr.mxu0 0.0
      %1291 = vmatpush1.msra.mxu0 0.0
      %1292 = vmatprep.subr.mxu0 0.0
      %1293 = vmatpush1.msra.mxu0 0.0
      %1294 = vmatprep.subr.mxu0 0.0
      %1295 = vmatpush1.msra.mxu0 0.0
      %1296 = vmatprep.subr.mxu0 0.0
      %1297 = vmatpush1.msra.mxu0 0.0
      %1298 = vmatprep.subr.mxu0 0.0
      %1299 = vmatpush1.msra.mxu0 0.0
      %1300 = vmatprep.subr.mxu0 0.0
      %1301 = vmatpush1.msra.mxu0 0.0
      %1302 = vmatprep.subr.mxu0 0.0
      %1303 = vmatpush1.msra.mxu0 0.0
      %1304 = vmatprep.subr.mxu0 0.0
      %1305 = vmatpush1.msra.mxu0 0.0
      %1306 = vmatprep.subr.mxu0 0.0
      %1307 = vmatpush1.msra.mxu0 0.0
      %1308 = vmatprep.subr.mxu0 0.0
      %1309 = vmatpush1.msra.mxu0 0.0
      %1310 = vmatprep.subr.mxu0 0.0
      %1311 = vmatpush1.msra.mxu0 0.0
      %1312 = vmatprep.subr.mxu0 0.0
      %1313 = vmatpush1.msra.mxu0 0.0
      %1314 = vmatprep.subr.mxu0 0.0
      %1315 = vmatpush1.msra.mxu0 0.0
      %1316 = vmatprep.subr.mxu0 0.0
      %1317 = vmatpush1.msra.mxu0 0.0
      %1318 = vmatprep.subr.mxu0 0.0
      %1319 = vmatpush1.msra.mxu0 0.0
      %1320 = vmatprep.subr.mxu0 0.0
      %1321 = vmatpush1.msra.mxu0 0.0
      %1322 = vmatprep.subr.mxu0 0.0
      %1323 = vmatpush1.msra.mxu0 0.0
      %1324 = vmatprep.mubr.f32.mxu0 0.0
      %1325 = vmatmul.mubr.f32.gmra.mrb[0].mxu0 %v706
      %v1326 = vpop.f32.mrb[0].mxu0
      %v1327 = vadd.f32 0.0, %v1326
      %v1328 = vpop.f32.mrb[0].mxu0
      %1329 = vmatprep.mubr.f32.mxu0 0.0
      %1330 = vmatmul.mubr.f32.gmra.mrb[0].mxu0 %v708
      %v1331 = vpop.f32.mrb[0].mxu0
      %v1332 = vadd.f32 0.0, %v1331
      %v1333 = vpop.f32.mrb[0].mxu0
      %1334 = vmatprep.mubr.f32.mxu0 0.0
      %1335 = vmatmul.mubr.f32.gmra.mrb[0].mxu0 %v710
      %v1336 = vpop.f32.mrb[0].mxu0
      %v1337 = vadd.f32 0.0, %v1336
      %v1338 = vpop.f32.mrb[0].mxu0
      %1339 = vmatprep.mubr.f32.mxu0 0.0
      %1340 = vmatmul.mubr.f32.gmra.mrb[0].mxu0 %v712
      %v1341 = vpop.f32.mrb[0].mxu0
      %v1342 = vadd.f32 0.0, %v1341
      %v1343 = vpop.f32.mrb[0].mxu0
      %1344 = vmatprep.mubr.f32.mxu0 0.0
      %1345 = vmatmul.mubr.f32.gmra.mrb[0].mxu0 %v714
      %v1346 = vpop.f32.mrb[0].mxu0
      %v1347 = vadd.f32 0.0, %v1346
      %v1348 = vpop.f32.mrb[0].mxu0
      %1349 = vmatprep.mubr.f32.mxu0 0.0
      %1350 = vmatmul.mubr.f32.gmra.mrb[0].mxu0 %v716
      %v1351 = vpop.f32.mrb[0].mxu0
      %v1352 = vadd.f32 0.0, %v1351
      %v1353 = vpop.f32.mrb[0].mxu0
      %1354 = vmatprep.mubr.f32.mxu0 0.0
      %1355 = vmatmul.mubr.f32.gmra.mrb[0].mxu0 %v718
      %v1356 = vpop.f32.mrb[0].mxu0
      %v1357 = vadd.f32 0.0, %v1356
      %v1358 = vpop.f32.mrb[0].mxu0
      %1359 = vmatprep.mubr.f32.mxu0 0.0
      %1360 = vmatmul.mubr.f32.gmra.mrb[0].mxu0 %v720
      %v1361 = vpop.f32.mrb[0].mxu0
      %v1362 = vadd.f32 0.0, %v1361
      %v1363 = vpop.f32.mrb[0].mxu0
      %1364 = vmatprep.mubr.f32.mxu0 0.0
      %1365 = vmatmul.mubr.f32.gmra.mrb[0].mxu0 %v722
      %v1366 = vpop.f32.mrb[0].mxu0
      %v1367 = vadd.f32 0.0, %v1366
      %v1368 = vpop.f32.mrb[0].mxu0
      %1369 = vmatprep.mubr.f32.mxu0 0.0
      %1370 = vmatmul.mubr.f32.gmra.mrb[0].mxu0 %v724
      %v1371 = vpop.f32.mrb[0].mxu0
      %v1372 = vadd.f32 0.0, %v1371
      %v1373 = vpop.f32.mrb[0].mxu0
      %1374 = vmatprep.mubr.f32.mxu0 0.0
      %1375 = vmatmul.mubr.f32.gmra.mrb[0].mxu0 %v726
      %v1376 = vpop.f32.mrb[0].mxu0
      %v1377 = vadd.f32 0.0, %v1376
      %v1378 = vpop.f32.mrb[0].mxu0
      %1379 = vmatprep.mubr.f32.mxu0 0.0
      %1380 = vmatmul.mubr.f32.gmra.mrb[0].mxu0 %v728
      %v1381 = vpop.f32.mrb[0].mxu0
      %v1382 = vadd.f32 0.0, %v1381
      %v1383 = vpop.f32.mrb[0].mxu0
      %1384 = vmatprep.mubr.f32.mxu0 0.0
      %1385 = vmatmul.mubr.f32.gmra.mrb[0].mxu0 %v730
      %v1386 = vpop.f32.mrb[0].mxu0
      %v1387 = vadd.f32 0.0, %v1386
      %v1388 = vpop.f32.mrb[0].mxu0
      %1389 = vmatprep.mubr.f32.mxu0 0.0
      %1390 = vmatmul.mubr.f32.gmra.mrb[0].mxu0 %v732
      %v1391 = vpop.f32.mrb[0].mxu0
      %v1392 = vadd.f32 0.0, %v1391
      %v1393 = vpop.f32.mrb[0].mxu0
      %1394 = vmatprep.mubr.f32.mxu0 0.0
      %1395 = vmatmul.mubr.f32.gmra.mrb[0].mxu0 %v1253
      %v1396 = vpop.f32.mrb[0].mxu0
      %v1397 = vadd.f32 0.0, %v1396
      %v1398 = vpop.f32.mrb[0].mxu0
      %1399 = vmatprep.mubr.f32.mxu0 0.0
      %1400 = vmatmul.mubr.f32.gmra.mrb[0].mxu0 %v1255
      %v1401 = vpop.f32.mrb[0].mxu0
      %v1402 = vadd.f32 0.0, %v1401
      %v1403 = vpop.f32.mrb[0].mxu0
      %1404 = vdwg.mxu0
      %v1405 = vadd.f32 %v1230, %v1327
      %v1406 = vadd.f32 %v1231, %v1332
      %v1407 = vadd.f32 %v1232, %v1337
      %v1408 = vadd.f32 %v1233, %v1342
      %v1409 = vadd.f32 %v1234, %v1347
      %v1410 = vadd.f32 %v1235, %v1352
      %v1411 = vadd.f32 %v1236, %v1357
      %v1412 = vadd.f32 %v1237, %v1362
      %v1413 = vadd.f32 %v1238, %v1367
      %v1414 = vadd.f32 %v1239, %v1372
      %v1415 = vadd.f32 %v1240, %v1377
      %v1416 = vadd.f32 %v1241, %v1382
      %v1417 = vadd.f32 %v1242, %v1387
      %v1418 = vadd.f32 %v1243, %v1392
      %v1419 = vadd.f32 %v1244, %v1397
      %v1420 = vadd.f32 %v1245, %v1402
      %s1421 = scalar_lea.vmem %s1, 24
      %v1422 = vld [vmem:[%s1421] sm:$0xf]
      %v1424 = vsel %vm297, %v226, 0
      %v1427 = vsel %vm297, %v227, 0
      %v1430 = vsel %vm330, %v1422, 0
      %1432 = vmatprep.subr.mxu0 0.0
      %1433 = vmatpush1.msra.mxu0 %v1430
      %1434 = vmatprep.subr.mxu0 0.0
      %1435 = vmatpush1.msra.mxu0 0.0
      %1436 = vmatprep.subr.mxu0 0.0
      %1437 = vmatpush1.msra.mxu0 0.0
      %1438 = vmatprep.subr.mxu0 0.0
      %1439 = vmatpush1.msra.mxu0 0.0
      %1440 = vmatprep.subr.mxu0 0.0
      %1441 = vmatpush1.msra.mxu0 0.0
      %1442 = vmatprep.subr.mxu0 0.0
      %1443 = vmatpush1.msra.mxu0 0.0
      %1444 = vmatprep.subr.mxu0 0.0
      %1445 = vmatpush1.msra.mxu0 0.0
      %1446 = vmatprep.subr.mxu0 0.0
      %1447 = vmatpush1.msra.mxu0 0.0
      %1448 = vmatprep.subr.mxu0 0.0
      %1449 = vmatpush1.msra.mxu0 0.0
      %1450 = vmatprep.subr.mxu0 0.0
      %1451 = vmatpush1.msra.mxu0 0.0
      %1452 = vmatprep.subr.mxu0 0.0
      %1453 = vmatpush1.msra.mxu0 0.0
      %1454 = vmatprep.subr.mxu0 0.0
      %1455 = vmatpush1.msra.mxu0 0.0
      %1456 = vmatprep.subr.mxu0 0.0
      %1457 = vmatpush1.msra.mxu0 0.0
      %1458 = vmatprep.subr.mxu0 0.0
      %1459 = vmatpush1.msra.mxu0 0.0
      %1460 = vmatprep.subr.mxu0 0.0
      %1461 = vmatpush1.msra.mxu0 0.0
      %1462 = vmatprep.subr.mxu0 0.0
      %1463 = vmatpush1.msra.mxu0 0.0
      %1464 = vmatprep.subr.mxu0 0.0
      %1465 = vmatpush1.msra.mxu0 0.0
      %1466 = vmatprep.subr.mxu0 0.0
      %1467 = vmatpush1.msra.mxu0 0.0
      %1468 = vmatprep.subr.mxu0 0.0
      %1469 = vmatpush1.msra.mxu0 0.0
      %1470 = vmatprep.subr.mxu0 0.0
      %1471 = vmatpush1.msra.mxu0 0.0
      %1472 = vmatprep.subr.mxu0 0.0
      %1473 = vmatpush1.msra.mxu0 0.0
      %1474 = vmatprep.subr.mxu0 0.0
      %1475 = vmatpush1.msra.mxu0 0.0
      %1476 = vmatprep.subr.mxu0 0.0
      %1477 = vmatpush1.msra.mxu0 0.0
      %1478 = vmatprep.subr.mxu0 0.0
      %1479 = vmatpush1.msra.mxu0 0.0
      %1480 = vmatprep.subr.mxu0 0.0
      %1481 = vmatpush1.msra.mxu0 0.0
      %1482 = vmatprep.subr.mxu0 0.0
      %1483 = vmatpush1.msra.mxu0 0.0
      %1484 = vmatprep.subr.mxu0 0.0
      %1485 = vmatpush1.msra.mxu0 0.0
      %1486 = vmatprep.subr.mxu0 0.0
      %1487 = vmatpush1.msra.mxu0 0.0
      %1488 = vmatprep.subr.mxu0 0.0
      %1489 = vmatpush1.msra.mxu0 0.0
      %1490 = vmatprep.subr.mxu0 0.0
      %1491 = vmatpush1.msra.mxu0 0.0
      %1492 = vmatprep.subr.mxu0 0.0
      %1493 = vmatpush1.msra.mxu0 0.0
      %1494 = vmatprep.subr.mxu0 0.0
      %1495 = vmatpush1.msra.mxu0 0.0
      %1496 = vmatprep.mubr.f32.mxu0 0.0
      %1497 = vmatmul.mubr.f32.gmra.mrb[0].mxu0 %v487
      %v1498 = vpop.f32.mrb[0].mxu0
      %v1499 = vadd.f32 0.0, %v1498
      %v1500 = vpop.f32.mrb[0].mxu0
      %1501 = vmatprep.mubr.f32.mxu0 0.0
      %1502 = vmatmul.mubr.f32.gmra.mrb[0].mxu0 %v489
      %v1503 = vpop.f32.mrb[0].mxu0
      %v1504 = vadd.f32 0.0, %v1503
      %v1505 = vpop.f32.mrb[0].mxu0
      %1506 = vmatprep.mubr.f32.mxu0 0.0
      %1507 = vmatmul.mubr.f32.gmra.mrb[0].mxu0 %v491
      %v1508 = vpop.f32.mrb[0].mxu0
      %v1509 = vadd.f32 0.0, %v1508
      %v1510 = vpop.f32.mrb[0].mxu0
      %1511 = vmatprep.mubr.f32.mxu0 0.0
      %1512 = vmatmul.mubr.f32.gmra.mrb[0].mxu0 %v493
      %v1513 = vpop.f32.mrb[0].mxu0
      %v1514 = vadd.f32 0.0, %v1513
      %v1515 = vpop.f32.mrb[0].mxu0
      %1516 = vmatprep.mubr.f32.mxu0 0.0
      %1517 = vmatmul.mubr.f32.gmra.mrb[0].mxu0 %v495
      %v1518 = vpop.f32.mrb[0].mxu0
      %v1519 = vadd.f32 0.0, %v1518
      %v1520 = vpop.f32.mrb[0].mxu0
      %1521 = vmatprep.mubr.f32.mxu0 0.0
      %1522 = vmatmul.mubr.f32.gmra.mrb[0].mxu0 %v497
      %v1523 = vpop.f32.mrb[0].mxu0
      %v1524 = vadd.f32 0.0, %v1523
      %v1525 = vpop.f32.mrb[0].mxu0
      %1526 = vmatprep.mubr.f32.mxu0 0.0
      %1527 = vmatmul.mubr.f32.gmra.mrb[0].mxu0 %v499
      %v1528 = vpop.f32.mrb[0].mxu0
      %v1529 = vadd.f32 0.0, %v1528
      %v1530 = vpop.f32.mrb[0].mxu0
      %1531 = vmatprep.mubr.f32.mxu0 0.0
      %1532 = vmatmul.mubr.f32.gmra.mrb[0].mxu0 %v501
      %v1533 = vpop.f32.mrb[0].mxu0
      %v1534 = vadd.f32 0.0, %v1533
      %v1535 = vpop.f32.mrb[0].mxu0
      %1536 = vmatprep.mubr.f32.mxu0 0.0
      %1537 = vmatmul.mubr.f32.gmra.mrb[0].mxu0 %v503
      %v1538 = vpop.f32.mrb[0].mxu0
      %v1539 = vadd.f32 0.0, %v1538
      %v1540 = vpop.f32.mrb[0].mxu0
      %1541 = vmatprep.mubr.f32.mxu0 0.0
      %1542 = vmatmul.mubr.f32.gmra.mrb[0].mxu0 %v505
      %v1543 = vpop.f32.mrb[0].mxu0
      %v1544 = vadd.f32 0.0, %v1543
      %v1545 = vpop.f32.mrb[0].mxu0
      %1546 = vmatprep.mubr.f32.mxu0 0.0
      %1547 = vmatmul.mubr.f32.gmra.mrb[0].mxu0 %v507
      %v1548 = vpop.f32.mrb[0].mxu0
      %v1549 = vadd.f32 0.0, %v1548
      %v1550 = vpop.f32.mrb[0].mxu0
      %1551 = vmatprep.mubr.f32.mxu0 0.0
      %1552 = vmatmul.mubr.f32.gmra.mrb[0].mxu0 %v509
      %v1553 = vpop.f32.mrb[0].mxu0
      %v1554 = vadd.f32 0.0, %v1553
      %v1555 = vpop.f32.mrb[0].mxu0
      %1556 = vmatprep.mubr.f32.mxu0 0.0
      %1557 = vmatmul.mubr.f32.gmra.mrb[0].mxu0 %v901
      %v1558 = vpop.f32.mrb[0].mxu0
      %v1559 = vadd.f32 0.0, %v1558
      %v1560 = vpop.f32.mrb[0].mxu0
      %1561 = vmatprep.mubr.f32.mxu0 0.0
      %1562 = vmatmul.mubr.f32.gmra.mrb[0].mxu0 %v904
      %v1563 = vpop.f32.mrb[0].mxu0
      %v1564 = vadd.f32 0.0, %v1563
      %v1565 = vpop.f32.mrb[0].mxu0
      %1566 = vmatprep.mubr.f32.mxu0 0.0
      %1567 = vmatmul.mubr.f32.gmra.mrb[0].mxu0 %v1424
      %v1568 = vpop.f32.mrb[0].mxu0
      %v1569 = vadd.f32 0.0, %v1568
      %v1570 = vpop.f32.mrb[0].mxu0
      %1571 = vmatprep.mubr.f32.mxu0 0.0
      %1572 = vmatmul.mubr.f32.gmra.mrb[0].mxu0 %v1427
      %v1573 = vpop.f32.mrb[0].mxu0
      %v1574 = vadd.f32 0.0, %v1573
      %v1575 = vpop.f32.mrb[0].mxu0
      %1576 = vdwg.mxu0
      %v1577 = vadd.f32 %v1405, %v1499
      %v1578 = vadd.f32 %v1406, %v1504
      %v1579 = vadd.f32 %v1407, %v1509
      %v1580 = vadd.f32 %v1408, %v1514
      %v1581 = vadd.f32 %v1409, %v1519
      %v1582 = vadd.f32 %v1410, %v1524
      %v1583 = vadd.f32 %v1411, %v1529
      %v1584 = vadd.f32 %v1412, %v1534
      %v1585 = vadd.f32 %v1413, %v1539
      %v1586 = vadd.f32 %v1414, %v1544
      %v1587 = vadd.f32 %v1415, %v1549
      %v1588 = vadd.f32 %v1416, %v1554
      %v1589 = vadd.f32 %v1417, %v1559
      %v1590 = vadd.f32 %v1418, %v1564
      %v1591 = vadd.f32 %v1419, %v1569
      %v1592 = vadd.f32 %v1420, %v1574
      %v1594 = vrot.slane %v226, 1
      %v1595 = vrot.slane %v227, 1
      %v1596 = vsel %vm254, %v1594, %v1595
      %v1597 = vrot.slane %v228, 1
      %v1598 = vsel %vm254, %v1595, %v1597
      %s1599 = scalar_lea.vmem %s1, 28
      %v1600 = vld [vmem:[%s1599] sm:$0xf]
      %v1601 = vsel %vm297, %v1596, 0
      %v1603 = vsel %vm297, %v1598, 0
      %v1606 = vsel %vm330, %v1600, 0
      %1608 = vmatprep.subr.mxu0 0.0
      %1609 = vmatpush1.msra.mxu0 %v1606
      %1610 = vmatprep.subr.mxu0 0.0
      %1611 = vmatpush1.msra.mxu0 0.0
      %1612 = vmatprep.subr.mxu0 0.0
      %1613 = vmatpush1.msra.mxu0 0.0
      %1614 = vmatprep.subr.mxu0 0.0
      %1615 = vmatpush1.msra.mxu0 0.0
      %1616 = vmatprep.subr.mxu0 0.0
      %1617 = vmatpush1.msra.mxu0 0.0
      %1618 = vmatprep.subr.mxu0 0.0
      %1619 = vmatpush1.msra.mxu0 0.0
      %1620 = vmatprep.subr.mxu0 0.0
      %1621 = vmatpush1.msra.mxu0 0.0
      %1622 = vmatprep.subr.mxu0 0.0
      %1623 = vmatpush1.msra.mxu0 0.0
      %1624 = vmatprep.subr.mxu0 0.0
      %1625 = vmatpush1.msra.mxu0 0.0
      %1626 = vmatprep.subr.mxu0 0.0
      %1627 = vmatpush1.msra.mxu0 0.0
      %1628 = vmatprep.subr.mxu0 0.0
      %1629 = vmatpush1.msra.mxu0 0.0
      %1630 = vmatprep.subr.mxu0 0.0
      %1631 = vmatpush1.msra.mxu0 0.0
      %1632 = vmatprep.subr.mxu0 0.0
      %1633 = vmatpush1.msra.mxu0 0.0
      %1634 = vmatprep.subr.mxu0 0.0
      %1635 = vmatpush1.msra.mxu0 0.0
      %1636 = vmatprep.subr.mxu0 0.0
      %1637 = vmatpush1.msra.mxu0 0.0
      %1638 = vmatprep.subr.mxu0 0.0
      %1639 = vmatpush1.msra.mxu0 0.0
      %1640 = vmatprep.subr.mxu0 0.0
      %1641 = vmatpush1.msra.mxu0 0.0
      %1642 = vmatprep.subr.mxu0 0.0
      %1643 = vmatpush1.msra.mxu0 0.0
      %1644 = vmatprep.subr.mxu0 0.0
      %1645 = vmatpush1.msra.mxu0 0.0
      %1646 = vmatprep.subr.mxu0 0.0
      %1647 = vmatpush1.msra.mxu0 0.0
      %1648 = vmatprep.subr.mxu0 0.0
      %1649 = vmatpush1.msra.mxu0 0.0
      %1650 = vmatprep.subr.mxu0 0.0
      %1651 = vmatpush1.msra.mxu0 0.0
      %1652 = vmatprep.subr.mxu0 0.0
      %1653 = vmatpush1.msra.mxu0 0.0
      %1654 = vmatprep.subr.mxu0 0.0
      %1655 = vmatpush1.msra.mxu0 0.0
      %1656 = vmatprep.subr.mxu0 0.0
      %1657 = vmatpush1.msra.mxu0 0.0
      %1658 = vmatprep.subr.mxu0 0.0
      %1659 = vmatpush1.msra.mxu0 0.0
      %1660 = vmatprep.subr.mxu0 0.0
      %1661 = vmatpush1.msra.mxu0 0.0
      %1662 = vmatprep.subr.mxu0 0.0
      %1663 = vmatpush1.msra.mxu0 0.0
      %1664 = vmatprep.subr.mxu0 0.0
      %1665 = vmatpush1.msra.mxu0 0.0
      %1666 = vmatprep.subr.mxu0 0.0
      %1667 = vmatpush1.msra.mxu0 0.0
      %1668 = vmatprep.subr.mxu0 0.0
      %1669 = vmatpush1.msra.mxu0 0.0
      %1670 = vmatprep.subr.mxu0 0.0
      %1671 = vmatpush1.msra.mxu0 0.0
      %1672 = vmatprep.mubr.f32.mxu0 0.0
      %1673 = vmatmul.mubr.f32.gmra.mrb[0].mxu0 %v306
      %v1674 = vpop.f32.mrb[0].mxu0
      %v1675 = vadd.f32 0.0, %v1674
      %v1676 = vpop.f32.mrb[0].mxu0
      %1677 = vmatprep.mubr.f32.mxu0 0.0
      %1678 = vmatmul.mubr.f32.gmra.mrb[0].mxu0 %v308
      %v1679 = vpop.f32.mrb[0].mxu0
      %v1680 = vadd.f32 0.0, %v1679
      %v1681 = vpop.f32.mrb[0].mxu0
      %1682 = vmatprep.mubr.f32.mxu0 0.0
      %1683 = vmatmul.mubr.f32.gmra.mrb[0].mxu0 %v310
      %v1684 = vpop.f32.mrb[0].mxu0
      %v1685 = vadd.f32 0.0, %v1684
      %v1686 = vpop.f32.mrb[0].mxu0
      %1687 = vmatprep.mubr.f32.mxu0 0.0
      %1688 = vmatmul.mubr.f32.gmra.mrb[0].mxu0 %v312
      %v1689 = vpop.f32.mrb[0].mxu0
      %v1690 = vadd.f32 0.0, %v1689
      %v1691 = vpop.f32.mrb[0].mxu0
      %1692 = vmatprep.mubr.f32.mxu0 0.0
      %1693 = vmatmul.mubr.f32.gmra.mrb[0].mxu0 %v314
      %v1694 = vpop.f32.mrb[0].mxu0
      %v1695 = vadd.f32 0.0, %v1694
      %v1696 = vpop.f32.mrb[0].mxu0
      %1697 = vmatprep.mubr.f32.mxu0 0.0
      %1698 = vmatmul.mubr.f32.gmra.mrb[0].mxu0 %v316
      %v1699 = vpop.f32.mrb[0].mxu0
      %v1700 = vadd.f32 0.0, %v1699
      %v1701 = vpop.f32.mrb[0].mxu0
      %1702 = vmatprep.mubr.f32.mxu0 0.0
      %1703 = vmatmul.mubr.f32.gmra.mrb[0].mxu0 %v318
      %v1704 = vpop.f32.mrb[0].mxu0
      %v1705 = vadd.f32 0.0, %v1704
      %v1706 = vpop.f32.mrb[0].mxu0
      %1707 = vmatprep.mubr.f32.mxu0 0.0
      %1708 = vmatmul.mubr.f32.gmra.mrb[0].mxu0 %v320
      %v1709 = vpop.f32.mrb[0].mxu0
      %v1710 = vadd.f32 0.0, %v1709
      %v1711 = vpop.f32.mrb[0].mxu0
      %1712 = vmatprep.mubr.f32.mxu0 0.0
      %1713 = vmatmul.mubr.f32.gmra.mrb[0].mxu0 %v322
      %v1714 = vpop.f32.mrb[0].mxu0
      %v1715 = vadd.f32 0.0, %v1714
      %v1716 = vpop.f32.mrb[0].mxu0
      %1717 = vmatprep.mubr.f32.mxu0 0.0
      %1718 = vmatmul.mubr.f32.gmra.mrb[0].mxu0 %v324
      %v1719 = vpop.f32.mrb[0].mxu0
      %v1720 = vadd.f32 0.0, %v1719
      %v1721 = vpop.f32.mrb[0].mxu0
      %1722 = vmatprep.mubr.f32.mxu0 0.0
      %1723 = vmatmul.mubr.f32.gmra.mrb[0].mxu0 %v326
      %v1724 = vpop.f32.mrb[0].mxu0
      %v1725 = vadd.f32 0.0, %v1724
      %v1726 = vpop.f32.mrb[0].mxu0
      %1727 = vmatprep.mubr.f32.mxu0 0.0
      %1728 = vmatmul.mubr.f32.gmra.mrb[0].mxu0 %v328
      %v1729 = vpop.f32.mrb[0].mxu0
      %v1730 = vadd.f32 0.0, %v1729
      %v1731 = vpop.f32.mrb[0].mxu0
      %1732 = vmatprep.mubr.f32.mxu0 0.0
      %1733 = vmatmul.mubr.f32.gmra.mrb[0].mxu0 %v1078
      %v1734 = vpop.f32.mrb[0].mxu0
      %v1735 = vadd.f32 0.0, %v1734
      %v1736 = vpop.f32.mrb[0].mxu0
      %1737 = vmatprep.mubr.f32.mxu0 0.0
      %1738 = vmatmul.mubr.f32.gmra.mrb[0].mxu0 %v1080
      %v1739 = vpop.f32.mrb[0].mxu0
      %v1740 = vadd.f32 0.0, %v1739
      %v1741 = vpop.f32.mrb[0].mxu0
      %1742 = vmatprep.mubr.f32.mxu0 0.0
      %1743 = vmatmul.mubr.f32.gmra.mrb[0].mxu0 %v1601
      %v1744 = vpop.f32.mrb[0].mxu0
      %v1745 = vadd.f32 0.0, %v1744
      %v1746 = vpop.f32.mrb[0].mxu0
      %1747 = vmatprep.mubr.f32.mxu0 0.0
      %1748 = vmatmul.mubr.f32.gmra.mrb[0].mxu0 %v1603
      %v1749 = vpop.f32.mrb[0].mxu0
      %v1750 = vadd.f32 0.0, %v1749
      %v1751 = vpop.f32.mrb[0].mxu0
      %1752 = vdwg.mxu0
      %v1753 = vadd.f32 %v1577, %v1675
      %v1754 = vadd.f32 %v1578, %v1680
      %v1755 = vadd.f32 %v1579, %v1685
      %v1756 = vadd.f32 %v1580, %v1690
      %v1757 = vadd.f32 %v1581, %v1695
      %v1758 = vadd.f32 %v1582, %v1700
      %v1759 = vadd.f32 %v1583, %v1705
      %v1760 = vadd.f32 %v1584, %v1710
      %v1761 = vadd.f32 %v1585, %v1715
      %v1762 = vadd.f32 %v1586, %v1720
      %v1763 = vadd.f32 %v1587, %v1725
      %v1764 = vadd.f32 %v1588, %v1730
      %v1765 = vadd.f32 %v1589, %v1735
      %v1766 = vadd.f32 %v1590, %v1740
      %v1767 = vadd.f32 %v1591, %v1745
      %v1768 = vadd.f32 %v1592, %v1750
      %v1769 = vrot.slane %v226, 2
      %v1770 = vrot.slane %v227, 2
      %v1771 = vsel %vm659, %v1769, %v1770
      %v1772 = vrot.slane %v228, 2
      %v1773 = vsel %vm659, %v1770, %v1772
      %s1774 = scalar_lea.vmem %s1, 32
      %v1775 = vld [vmem:[%s1774] sm:$0xf]
      %v1776 = vsel %vm297, %v1771, 0
      %v1778 = vsel %vm297, %v1773, 0
      %v1781 = vsel %vm330, %v1775, 0
      %1783 = vmatprep.subr.mxu0 0.0
      %1784 = vmatpush1.msra.mxu0 %v1781
      %1785 = vmatprep.subr.mxu0 0.0
      %1786 = vmatpush1.msra.mxu0 0.0
      %1787 = vmatprep.subr.mxu0 0.0
      %1788 = vmatpush1.msra.mxu0 0.0
      %1789 = vmatprep.subr.mxu0 0.0
      %1790 = vmatpush1.msra.mxu0 0.0
      %1791 = vmatprep.subr.mxu0 0.0
      %1792 = vmatpush1.msra.mxu0 0.0
      %1793 = vmatprep.subr.mxu0 0.0
      %1794 = vmatpush1.msra.mxu0 0.0
      %1795 = vmatprep.subr.mxu0 0.0
      %1796 = vmatpush1.msra.mxu0 0.0
      %1797 = vmatprep.subr.mxu0 0.0
      %1798 = vmatpush1.msra.mxu0 0.0
      %1799 = vmatprep.subr.mxu0 0.0
      %1800 = vmatpush1.msra.mxu0 0.0
      %1801 = vmatprep.subr.mxu0 0.0
      %1802 = vmatpush1.msra.mxu0 0.0
      %1803 = vmatprep.subr.mxu0 0.0
      %1804 = vmatpush1.msra.mxu0 0.0
      %1805 = vmatprep.subr.mxu0 0.0
      %1806 = vmatpush1.msra.mxu0 0.0
      %1807 = vmatprep.subr.mxu0 0.0
      %1808 = vmatpush1.msra.mxu0 0.0
      %1809 = vmatprep.subr.mxu0 0.0
      %1810 = vmatpush1.msra.mxu0 0.0
      %1811 = vmatprep.subr.mxu0 0.0
      %1812 = vmatpush1.msra.mxu0 0.0
      %1813 = vmatprep.subr.mxu0 0.0
      %1814 = vmatpush1.msra.mxu0 0.0
      %1815 = vmatprep.subr.mxu0 0.0
      %1816 = vmatpush1.msra.mxu0 0.0
      %1817 = vmatprep.subr.mxu0 0.0
      %1818 = vmatpush1.msra.mxu0 0.0
      %1819 = vmatprep.subr.mxu0 0.0
      %1820 = vmatpush1.msra.mxu0 0.0
      %1821 = vmatprep.subr.mxu0 0.0
      %1822 = vmatpush1.msra.mxu0 0.0
      %1823 = vmatprep.subr.mxu0 0.0
      %1824 = vmatpush1.msra.mxu0 0.0
      %1825 = vmatprep.subr.mxu0 0.0
      %1826 = vmatpush1.msra.mxu0 0.0
      %1827 = vmatprep.subr.mxu0 0.0
      %1828 = vmatpush1.msra.mxu0 0.0
      %1829 = vmatprep.subr.mxu0 0.0
      %1830 = vmatpush1.msra.mxu0 0.0
      %1831 = vmatprep.subr.mxu0 0.0
      %1832 = vmatpush1.msra.mxu0 0.0
      %1833 = vmatprep.subr.mxu0 0.0
      %1834 = vmatpush1.msra.mxu0 0.0
      %1835 = vmatprep.subr.mxu0 0.0
      %1836 = vmatpush1.msra.mxu0 0.0
      %1837 = vmatprep.subr.mxu0 0.0
      %1838 = vmatpush1.msra.mxu0 0.0
      %1839 = vmatprep.subr.mxu0 0.0
      %1840 = vmatpush1.msra.mxu0 0.0
      %1841 = vmatprep.subr.mxu0 0.0
      %1842 = vmatpush1.msra.mxu0 0.0
      %1843 = vmatprep.subr.mxu0 0.0
      %1844 = vmatpush1.msra.mxu0 0.0
      %1845 = vmatprep.subr.mxu0 0.0
      %1846 = vmatpush1.msra.mxu0 0.0
      %1847 = vmatprep.mubr.f32.mxu0 0.0
      %1848 = vmatmul.mubr.f32.gmra.mrb[0].mxu0 %v710
      %v1849 = vpop.f32.mrb[0].mxu0
      %v1850 = vadd.f32 0.0, %v1849
      %v1851 = vpop.f32.mrb[0].mxu0
      %1852 = vmatprep.mubr.f32.mxu0 0.0
      %1853 = vmatmul.mubr.f32.gmra.mrb[0].mxu0 %v712
      %v1854 = vpop.f32.mrb[0].mxu0
      %v1855 = vadd.f32 0.0, %v1854
      %v1856 = vpop.f32.mrb[0].mxu0
      %1857 = vmatprep.mubr.f32.mxu0 0.0
      %1858 = vmatmul.mubr.f32.gmra.mrb[0].mxu0 %v714
      %v1859 = vpop.f32.mrb[0].mxu0
      %v1860 = vadd.f32 0.0, %v1859
      %v1861 = vpop.f32.mrb[0].mxu0
      %1862 = vmatprep.mubr.f32.mxu0 0.0
      %1863 = vmatmul.mubr.f32.gmra.mrb[0].mxu0 %v716
      %v1864 = vpop.f32.mrb[0].mxu0
      %v1865 = vadd.f32 0.0, %v1864
      %v1866 = vpop.f32.mrb[0].mxu0
      %1867 = vmatprep.mubr.f32.mxu0 0.0
      %1868 = vmatmul.mubr.f32.gmra.mrb[0].mxu0 %v718
      %v1869 = vpop.f32.mrb[0].mxu0
      %v1870 = vadd.f32 0.0, %v1869
      %v1871 = vpop.f32.mrb[0].mxu0
      %1872 = vmatprep.mubr.f32.mxu0 0.0
      %1873 = vmatmul.mubr.f32.gmra.mrb[0].mxu0 %v720
      %v1874 = vpop.f32.mrb[0].mxu0
      %v1875 = vadd.f32 0.0, %v1874
      %v1876 = vpop.f32.mrb[0].mxu0
      %1877 = vmatprep.mubr.f32.mxu0 0.0
      %1878 = vmatmul.mubr.f32.gmra.mrb[0].mxu0 %v722
      %v1879 = vpop.f32.mrb[0].mxu0
      %v1880 = vadd.f32 0.0, %v1879
      %v1881 = vpop.f32.mrb[0].mxu0
      %1882 = vmatprep.mubr.f32.mxu0 0.0
      %1883 = vmatmul.mubr.f32.gmra.mrb[0].mxu0 %v724
      %v1884 = vpop.f32.mrb[0].mxu0
      %v1885 = vadd.f32 0.0, %v1884
      %v1886 = vpop.f32.mrb[0].mxu0
      %1887 = vmatprep.mubr.f32.mxu0 0.0
      %1888 = vmatmul.mubr.f32.gmra.mrb[0].mxu0 %v726
      %v1889 = vpop.f32.mrb[0].mxu0
      %v1890 = vadd.f32 0.0, %v1889
      %v1891 = vpop.f32.mrb[0].mxu0
      %1892 = vmatprep.mubr.f32.mxu0 0.0
      %1893 = vmatmul.mubr.f32.gmra.mrb[0].mxu0 %v728
      %v1894 = vpop.f32.mrb[0].mxu0
      %v1895 = vadd.f32 0.0, %v1894
      %v1896 = vpop.f32.mrb[0].mxu0
      %1897 = vmatprep.mubr.f32.mxu0 0.0
      %1898 = vmatmul.mubr.f32.gmra.mrb[0].mxu0 %v730
      %v1899 = vpop.f32.mrb[0].mxu0
      %v1900 = vadd.f32 0.0, %v1899
      %v1901 = vpop.f32.mrb[0].mxu0
      %1902 = vmatprep.mubr.f32.mxu0 0.0
      %1903 = vmatmul.mubr.f32.gmra.mrb[0].mxu0 %v732
      %v1904 = vpop.f32.mrb[0].mxu0
      %v1905 = vadd.f32 0.0, %v1904
      %v1906 = vpop.f32.mrb[0].mxu0
      %1907 = vmatprep.mubr.f32.mxu0 0.0
      %1908 = vmatmul.mubr.f32.gmra.mrb[0].mxu0 %v1253
      %v1909 = vpop.f32.mrb[0].mxu0
      %v1910 = vadd.f32 0.0, %v1909
      %v1911 = vpop.f32.mrb[0].mxu0
      %1912 = vmatprep.mubr.f32.mxu0 0.0
      %1913 = vmatmul.mubr.f32.gmra.mrb[0].mxu0 %v1255
      %v1914 = vpop.f32.mrb[0].mxu0
      %v1915 = vadd.f32 0.0, %v1914
      %v1916 = vpop.f32.mrb[0].mxu0
      %1917 = vmatprep.mubr.f32.mxu0 0.0
      %1918 = vmatmul.mubr.f32.gmra.mrb[0].mxu0 %v1776
      %v1919 = vpop.f32.mrb[0].mxu0
      %v1920 = vadd.f32 0.0, %v1919
      %v1921 = vpop.f32.mrb[0].mxu0
      %1922 = vmatprep.mubr.f32.mxu0 0.0
      %1923 = vmatmul.mubr.f32.gmra.mrb[0].mxu0 %v1778
      %v1924 = vpop.f32.mrb[0].mxu0
      %v1925 = vadd.f32 0.0, %v1924
      %v1926 = vpop.f32.mrb[0].mxu0
      %1927 = vdwg.mxu0
      %v1928 = vadd.f32 %v1753, %v1850
      %v1929 = vadd.f32 %v1754, %v1855
      %v1930 = vadd.f32 %v1755, %v1860
      %v1931 = vadd.f32 %v1756, %v1865
      %v1932 = vadd.f32 %v1757, %v1870
      %v1933 = vadd.f32 %v1758, %v1875
      %v1934 = vadd.f32 %v1759, %v1880
      %v1935 = vadd.f32 %v1760, %v1885
      %v1936 = vadd.f32 %v1761, %v1890
      %v1937 = vadd.f32 %v1762, %v1895
      %v1938 = vadd.f32 %v1763, %v1900
      %v1939 = vadd.f32 %v1764, %v1905
      %v1940 = vadd.f32 %v1765, %v1910
      %v1941 = vadd.f32 %v1766, %v1915
      %v1942 = vadd.f32 %v1767, %v1920
      %v1943 = vadd.f32 %v1768, %v1925
      %v1944 = vld [vmem:[%s2] sm:$0x1]
      %v1946 = vlaneseq
      %v1947 = vshrl.u32 %v1946, 7
      %v1948 = vsub.s32 0, %v1947
      %v1949 = vrot.slane %v1944, %v1948
      %v1951 = vadd.f32 %v1928, %v1949
      %v1952 = vadd.f32 %v1929, %v1949
      %v1953 = vadd.f32 %v1930, %v1949
      %v1954 = vadd.f32 %v1931, %v1949
      %v1955 = vadd.f32 %v1932, %v1949
      %v1956 = vadd.f32 %v1933, %v1949
      %v1957 = vadd.f32 %v1934, %v1949
      %v1958 = vadd.f32 %v1935, %v1949
      %v1959 = vadd.f32 %v1936, %v1949
      %v1960 = vadd.f32 %v1937, %v1949
      %v1961 = vadd.f32 %v1938, %v1949
      %v1962 = vadd.f32 %v1939, %v1949
      %v1963 = vadd.f32 %v1940, %v1949
      %v1964 = vadd.f32 %v1941, %v1949
      %v1965 = vadd.f32 %v1942, %v1949
      %v1966 = vadd.f32 %v1943, %v1949
      %v1967 = vmul.f32 %v1951, 0.5
      %v1968 = vmul.f32 %v1952, 0.5
      %v1969 = vmul.f32 %v1953, 0.5
      %v1970 = vmul.f32 %v1954, 0.5
      %v1971 = vmul.f32 %v1955, 0.5
      %v1972 = vmul.f32 %v1956, 0.5
      %v1973 = vmul.f32 %v1957, 0.5
      %v1974 = vmul.f32 %v1958, 0.5
      %v1975 = vmul.f32 %v1959, 0.5
      %v1976 = vmul.f32 %v1960, 0.5
      %v1977 = vmul.f32 %v1961, 0.5
      %v1978 = vmul.f32 %v1962, 0.5
      %v1979 = vmul.f32 %v1963, 0.5
      %v1980 = vmul.f32 %v1964, 0.5
      %v1981 = vmul.f32 %v1965, 0.5
      %v1982 = vmul.f32 %v1966, 0.5
      %v1983 = vmul.f32 %v1951, 0.70710677
      %v1984 = vmul.f32 %v1952, 0.70710677
      %v1985 = vmul.f32 %v1953, 0.70710677
      %v1986 = vmul.f32 %v1954, 0.70710677
      %v1987 = vmul.f32 %v1955, 0.70710677
      %v1988 = vmul.f32 %v1956, 0.70710677
      %v1989 = vmul.f32 %v1957, 0.70710677
      %v1990 = vmul.f32 %v1958, 0.70710677
      %v1991 = vmul.f32 %v1959, 0.70710677
      %v1992 = vmul.f32 %v1960, 0.70710677
      %v1993 = vmul.f32 %v1961, 0.70710677
      %v1994 = vmul.f32 %v1962, 0.70710677
      %v1995 = vmul.f32 %v1963, 0.70710677
      %v1996 = vmul.f32 %v1964, 0.70710677
      %v1997 = vmul.f32 %v1965, 0.70710677
      %v1998 = vmul.f32 %v1966, 0.70710677
      %v1999 = verf.f32.pop %v1983
      %v2000 = verf.f32.pop %v1984
      %v2001 = verf.f32.pop %v1985
      %v2002 = verf.f32.pop %v1986
      %v2003 = verf.f32.pop %v1987
      %v2004 = verf.f32.pop %v1988
      %v2005 = verf.f32.pop %v1989
      %v2006 = verf.f32.pop %v1990
      %v2007 = verf.f32.pop %v1991
      %v2008 = verf.f32.pop %v1992
      %v2009 = verf.f32.pop %v1993
      %v2010 = verf.f32.pop %v1994
      %v2011 = verf.f32.pop %v1995
      %v2012 = verf.f32.pop %v1996
      %v2013 = verf.f32.pop %v1997
      %v2014 = verf.f32.pop %v1998
      %v2015 = vadd.f32 %v1999, 1.0
      %v2016 = vadd.f32 %v2000, 1.0
      %v2017 = vadd.f32 %v2001, 1.0
      %v2018 = vadd.f32 %v2002, 1.0
      %v2019 = vadd.f32 %v2003, 1.0
      %v2020 = vadd.f32 %v2004, 1.0
      %v2021 = vadd.f32 %v2005, 1.0
      %v2022 = vadd.f32 %v2006, 1.0
      %v2023 = vadd.f32 %v2007, 1.0
      %v2024 = vadd.f32 %v2008, 1.0
      %v2025 = vadd.f32 %v2009, 1.0
      %v2026 = vadd.f32 %v2010, 1.0
      %v2027 = vadd.f32 %v2011, 1.0
      %v2028 = vadd.f32 %v2012, 1.0
      %v2029 = vadd.f32 %v2013, 1.0
      %v2030 = vadd.f32 %v2014, 1.0
      %v2031 = vmul.f32 %v1967, %v2015
      %v2032 = vmul.f32 %v1968, %v2016
      %v2033 = vmul.f32 %v1969, %v2017
      %v2034 = vmul.f32 %v1970, %v2018
      %v2035 = vmul.f32 %v1971, %v2019
      %v2036 = vmul.f32 %v1972, %v2020
      %v2037 = vmul.f32 %v1973, %v2021
      %v2038 = vmul.f32 %v1974, %v2022
      %v2039 = vmul.f32 %v1975, %v2023
      %v2040 = vmul.f32 %v1976, %v2024
      %v2041 = vmul.f32 %v1977, %v2025
      %v2042 = vmul.f32 %v1978, %v2026
      %v2043 = vmul.f32 %v1979, %v2027
      %v2044 = vmul.f32 %v1980, %v2028
      %v2045 = vmul.f32 %v1981, %v2029
      %v2046 = vmul.f32 %v1982, %v2030
      %vm2047 = vcmask 64512
      %2048 = vst.msk [vmem:[%s194] sm:$0xff] %vm2047, %v2031
      %2049 = vst.msk [vmem:[%s194 + $0x8] sm:$0xff] %vm2047, %v2032
      %2050 = vst.msk [vmem:[%s194 + $0x10] sm:$0xff] %vm2047, %v2033
      %2051 = vst.msk [vmem:[%s194 + $0x18] sm:$0xff] %vm2047, %v2034
      %2052 = vst.msk [vmem:[%s194 + $0x20] sm:$0xff] %vm2047, %v2035
      %2053 = vst.msk [vmem:[%s194 + $0x28] sm:$0xff] %vm2047, %v2036
      %2054 = vst.msk [vmem:[%s194 + $0x30] sm:$0xff] %vm2047, %v2037
      %2055 = vst.msk [vmem:[%s194 + $0x38] sm:$0xff] %vm2047, %v2038
      %2056 = vst.msk [vmem:[%s194 + $0x40] sm:$0xff] %vm2047, %v2039
      %2057 = vst.msk [vmem:[%s194 + $0x48] sm:$0xff] %vm2047, %v2040
      %2058 = vst.msk [vmem:[%s194 + $0x50] sm:$0xff] %vm2047, %v2041
      %2059 = vst.msk [vmem:[%s194 + $0x58] sm:$0xff] %vm2047, %v2042
      %2060 = vst.msk [vmem:[%s194 + $0x60] sm:$0xff] %vm2047, %v2043
      %2061 = vst.msk [vmem:[%s194 + $0x68] sm:$0xff] %vm2047, %v2044
      %2062 = vst.msk [vmem:[%s194 + $0x70] sm:$0xff] %vm2047, %v2045
      %2063 = vst.msk [vmem:[%s194 + $0x78] sm:$0xff] %vm2047, %v2046
      %s2064 = smul.u32 8, %s19
      %p2065 = scmp.lt.s32.totalorder %s18, 1
      %s2066 = scalar_select %p2065, %s18, 1
      %p2067 = scmp.lt.s32.totalorder %s2064, 15
      %s2068 = scalar_select %p2067, %s2064, 15
      %s2069 = smul.addr %s2068, 2
      %s2070 = smul.addr %s2066, 32
      %s2071 = sadd.s32 %s2069, %s2070
      %s2072 = smul.addr %s2071, 8
      %s2073 = scalar_lea.vmem %s3, %s2072
      // Predicated region
      $region33: #{basic_conv.1} parent=31 // pred_check
        %p2074 = pneg %p114
      $region34: #{basic_conv.1} parent=31 // pred_check_branch
        %2076 = sbr.rel (%p2074) target = $region36
      $region35: #{basic_conv.1} parent=31 // pred_region
        %s2077 = smul.u32 8, %s19
      $region36: #{basic_conv.1} parent=31 // pred_fallthru
        _
    $region32: #{basic_conv.1} parent=5 // pred_fallthru
      _
    %p2078 = scmp.le.s32.totalorder 2, %s9
    // Predicated region
    $region37: #{basic_conv.1} parent=5 // pred_check
      %p2079 = pneg %p2078
    $region38: #{basic_conv.1} parent=5 // pred_check_branch
      %2081 = sbr.rel (%p2079) target = $region40
    $region39: #{basic_conv.1} parent=5 // pred_region
      %s2082 = ssub.s32 %s9, 2
      // Predicated region
      $region41: #{basic_conv.1} parent=39 // pred_check
        %p2083 = pneg %p120
      $region42: #{basic_conv.1} parent=39 // pred_check_branch
        %2085 = sbr.rel (%p2083) target = $region44
      $region43: #{basic_conv.1} parent=39 // pred_region
        %s2086 = smul.u32 8, %s21
        %p2087 = scmp.lt.s32.totalorder %s20, 1
        %s2088 = scalar_select %p2087, %s20, 1
        %p2089 = scmp.lt.s32.totalorder %s2086, 15
        %s2090 = scalar_select %p2089, %s2086, 15
        %s2091 = smul.addr %s2090, 2
        %s2092 = smul.addr %s2088, 32
        %s2093 = sadd.s32 %s2091, %s2092
        %s2094 = smul.addr %s2093, 8
        %s2095 = scalar_lea.vmem %s3, %s2094
      $region44: #{basic_conv.1} parent=39 // pred_fallthru
        _
    $region40: #{basic_conv.1} parent=5 // pred_fallthru
      _
  $region6: #{basic_conv.1} parent=0 // loop_footer
    %s13 = sadd.s32 1, %s9
  $region7: #{basic_conv.1} parent=0 // loop_footer_branch
    %8 = sbr.rel target = $region3
  $region8: #{basic_conv.1} parent=0 // loop_exit
    _

</llo_original>
